<compile_context>
chip_gen: v6e
topology: v6e:2x2x1
jax: 0.10.0
libtpu: 0.0.40
codegen_flags: <defaults>
</compile_context>

<pallas_src>
import jax
import jax.numpy as jnp
from jax.experimental import pallas as pl
from jax.experimental.pallas import tpu as pltpu

DEGREE = 3          # Chebyshev degree (ChebyKAN default)
SUBLANE = 8         # batch tiles are multiples of this
MAX_TILE_B = 2048   # upper bound on rows per grid step


def _round_up(n, m):
    return ((n + m - 1) // m) * m


# -----------------------------------------------------------------------------
# Kernel
# -----------------------------------------------------------------------------
def _cheby_layer(a, w_ref, b_ref):
    """One ChebyKAN layer: tanh -> Chebyshev recurrence (VPU/EUP) -> per-degree
    MXU accumulation.  The constant T_0 term is pre-folded into b_ref.

      a:     [B, I]           f32 activations
      w_ref: [DEGREE, I, O]   coefficients of T_1..T_DEGREE (f32 or bf16)
      b_ref: [1, O]           f32 bias  (= sum_i W[i, :, 0])
      returns [B, O] f32
    """
    mxu = w_ref.dtype
    t = jnp.tanh(a)                                               # EUP, f32

    # T_1 term + folded T_0 (constant) term.
    acc = b_ref[...] + jnp.dot(t.astype(mxu), w_ref[0],
                               preferred_element_type=jnp.float32)

    # T_2 = 2 t^2 - 1 explicitly (no [B, I] ones broadcast is materialized).
    t_prev, t_cur = t, 2.0 * t * t - 1.0
    acc = acc + jnp.dot(t_cur.astype(mxu), w_ref[1],
                        preferred_element_type=jnp.float32)

    # Degrees 3..DEGREE via T_d = 2 t T_{d-1} - T_{d-2}  (VPU, hides under MXU).
    for d in range(3, DEGREE + 1):
        t_prev, t_cur = t_cur, 2.0 * t * t_cur - t_prev
        acc = acc + jnp.dot(t_cur.astype(mxu), w_ref[d - 1],
                            preferred_element_type=jnp.float32)
    return acc


def _cheby_kan_kernel(x_ref, w1_ref, b1_ref, w2_ref, b2_ref, o_ref):
    h = _cheby_layer(x_ref[...].astype(jnp.float32), w1_ref, b1_ref)  # [TB, H]
    y = _cheby_layer(h, w2_ref, b2_ref)                               # [TB, O]
    o_ref[...] = y.astype(o_ref.dtype)


# -----------------------------------------------------------------------------
# Wrapper
# -----------------------------------------------------------------------------
def _prep_layer_params(w_3d, mxu_dtype):
    """ChebyKAN coeffs [in, out, DEGREE+1] ->
         W: [DEGREE, in, out]  (coeffs of T_1..T_DEGREE, mxu_dtype)
         b: [1, out]           (folded T_0 term, f32)
    """
    din, dout, degp1 = w_3d.shape
    assert degp1 == DEGREE + 1
    bias = jnp.sum(w_3d[:, :, 0], axis=0).reshape(1, dout).astype(jnp.float32)
    w = jnp.transpose(w_3d[:, :, 1:], (2, 0, 1)).astype(mxu_dtype)
    return w, bias


def _choose_batch_tiling(B, max_tile_b=MAX_TILE_B):
    """Pick (tile_b, padded_B) with minimal padding; >=2 tiles when possible so
    the 'parallel' grid axis can shard across TensorCores on v7x."""
    n_tiles = max(1, -(-B // max_tile_b))
    if n_tiles == 1 and B >= 2 * SUBLANE:
        n_tiles = 2
    tile_b = _round_up(-(-B // n_tiles), SUBLANE)
    return tile_b, tile_b * n_tiles


def _pallas_forward(x_p, w1, b1, w2, b2, tile_b, single_buffer_weights):
    b_p, din = x_p.shape
    hdim = w1.shape[2]
    dout = w2.shape[2]
    mxu_bytes = jnp.dtype(w1.dtype).itemsize
    n_weight_bufs = 1 if single_buffer_weights else 2

    def const_spec(shape):
        idx = lambda i: (0,) * len(shape)
        if single_buffer_weights:
            return pl.BlockSpec(shape, idx, pipeline_mode=pl.Buffered(1))
        return pl.BlockSpec(shape, idx)

    # Scoped-VMEM budget: activations double-buffered, weights single-buffered,
    # plus headroom for the in-flight Chebyshev temporaries.
    est = (2 * tile_b * din * 4
           + 2 * tile_b * dout * 4
           + n_weight_bufs * DEGREE * (din * hdim + hdim * dout) * mxu_bytes
           + n_weight_bufs * (hdim + dout) * 4
           + 6 * tile_b * max(din, hdim, dout) * 4)
    vmem_limit = int(min(max(2 * est, 16 * 1024 * 1024), 100 * 1024 * 1024))

    cost = pl.CostEstimate(
        flops=2 * DEGREE * b_p * (din * hdim + hdim * dout),
        transcendentals=b_p * (din + hdim),
        bytes_accessed=(b_p * (din + dout)) * 4
        + DEGREE * (din * hdim + hdim * dout) * mxu_bytes
        + (hdim + dout) * 4,
    )

    call = pl.pallas_call(
        _cheby_kan_kernel,
        out_shape=jax.ShapeDtypeStruct((b_p, dout), jnp.float32),
        grid_spec=pltpu.PrefetchScalarGridSpec(
            num_scalar_prefetch=0,
            grid=(b_p // tile_b,),
            in_specs=[
                # Batch tile of activations: double-buffered along the grid.
                pl.BlockSpec((tile_b, din), lambda i: (i, 0)),
                # Weights / biases: constant block index -> VMEM-resident.
                const_spec((DEGREE, din, hdim)),
                const_spec((1, hdim)),
                const_spec((DEGREE, hdim, dout)),
                const_spec((1, dout)),
            ],
            out_specs=pl.BlockSpec((tile_b, dout), lambda i: (i, 0)),
        ),
        compiler_params=pltpu.CompilerParams(
            dimension_semantics=("parallel",),   # shard batch tiles across TCs
            vmem_limit_bytes=vmem_limit,
        ),
        cost_estimate=cost,
    )
    return call(x_p, w1, b1, w2, b2)


def kan_branch_net(x, w1_3d, w2_3d, *, mxu_dtype=jnp.bfloat16,
                   max_tile_b=MAX_TILE_B):
    """Forward pass of KANBranchNet (cheby_kan branch).

      x:      [B, Din]  float32
      w1_3d:  [Din, H, DEGREE+1]   ChebyKAN layer-1 coefficients
      w2_3d:  [H, Dout, DEGREE+1]  ChebyKAN layer-2 coefficients
    """
    B, din = x.shape
    assert w1_3d.shape[0] == din and w1_3d.shape[2] == DEGREE + 1
    hdim = w1_3d.shape[1]
    assert w2_3d.shape[0] == hdim and w2_3d.shape[2] == DEGREE + 1

    x = x.astype(jnp.float32)
    tile_b, b_p = _choose_batch_tiling(B, max_tile_b)
    x_in = x if b_p == B else jnp.zeros((b_p, din), jnp.float32).at[:B].set(x)

    w1, b1 = _prep_layer_params(w1_3d, mxu_dtype)
    w2, b2 = _prep_layer_params(w2_3d, mxu_dtype)

    try:
        out = _pallas_forward(x_in, w1, b1, w2, b2, tile_b,
                              single_buffer_weights=True)
    except Exception:
        # pipeline_mode=pl.Buffered(1) unsupported -> default double buffering.
        out = _pallas_forward(x_in, w1, b1, w2, b2, tile_b,
                              single_buffer_weights=False)
    return out if b_p == B else out[:B]


# -----------------------------------------------------------------------------
# Pure-JAX reference (einsum semantics of ChebyKANLayer)
# -----------------------------------------------------------------------------
def _ref_forward(x, w1_3d, w2_3d, degree=DEGREE):
    def layer(a, w):
        t = jnp.tanh(a)
        polys = [jnp.ones_like(t)]
        if degree >= 1:
            polys.append(t)
        for _ in range(2, degree + 1):
            polys.append(2.0 * t * polys[-1] - polys[-2])
        basis = jnp.stack(polys, axis=-1)                 # [B, I, deg+1]
        return jnp.einsum('bid,iod->bo', basis, w, precision='highest')
    return layer(layer(x, w1_3d), w2_3d)


if __name__ == "__main__":
    # Small shapes consistent with KANBranchNet(input_dim, hidden_dim, output_dim)
    batch, input_dim, hidden_dim, output_dim = 32, 16, 32, 32

    key = jax.random.PRNGKey(0)
    kx, k1, k2 = jax.random.split(key, 3)

    x = jax.random.normal(kx, (batch, input_dim), dtype=jnp.float32)

    # ChebyKAN init: coeffs ~ N(0, 1/(in_dim*(degree+1)))
    w1_3d = jax.random.normal(k1, (input_dim, hidden_dim, DEGREE + 1),
                              dtype=jnp.float32) / (input_dim * (DEGREE + 1))
    w2_3d = jax.random.normal(k2, (hidden_dim, output_dim, DEGREE + 1),
                              dtype=jnp.float32) / (hidden_dim * (DEGREE + 1))

    ref = _ref_forward(x, w1_3d, w2_3d)

    # Default path: bf16 MXU operands, f32 accumulation (looser tolerance).
    out_bf16 = jax.block_until_ready(kan_branch_net(x, w1_3d, w2_3d))
    assert out_bf16.shape == (batch, output_dim)
    assert float(jnp.max(jnp.abs(out_bf16 - ref))) < 3e-2, \
        "bf16 path mismatch vs reference"

    # f32 MXU path: must match the reference tightly.
    out_f32 = jax.block_until_ready(
        kan_branch_net(x, w1_3d, w2_3d, mxu_dtype=jnp.float32))
    assert jnp.allclose(out_f32, ref, atol=1e-4, rtol=1e-4), \
        "f32 path mismatch vs reference"

    # Batch not a multiple of the tile size: exercises the batch-padding path.
    x2 = jax.random.normal(kx, (10, input_dim), dtype=jnp.float32)
    out2 = jax.block_until_ready(kan_branch_net(x2, w1_3d, w2_3d))
    assert float(jnp.max(jnp.abs(out2 - _ref_forward(x2, w1_3d, w2_3d)))) < 3e-2, \
        "padded-batch mismatch vs reference"

    print("KERNEL_OK")
</pallas_src>

<mosaic_0001>
module attributes {stable_mosaic.version = 11 : i64} {
  func.func @_cheby_kan_kernel(%arg0: i32, %arg1: memref<16x16xf32, #tpu.memory_space<vmem>>, %arg2: memref<3x16x32xbf16, #tpu.memory_space<vmem>>, %arg3: memref<1x32xf32, #tpu.memory_space<vmem>>, %arg4: memref<3x32x32xbf16, #tpu.memory_space<vmem>>, %arg5: memref<1x32xf32, #tpu.memory_space<vmem>>, %arg6: memref<16x32xf32, #tpu.memory_space<vmem>>) attributes {dimension_semantics = [#tpu.dimension_semantics<parallel>], iteration_bounds = array<i64: 2>, scalar_prefetch = 0 : i64, scratch_operands = 0 : i64, tpu.core_type = #tpu.core_type<tc>, window_params = [{transform_indices = @transform_0, window_bounds = array<i64: 16, 16>}, {pipeline_mode = #tpu.pipeline_mode<synchronous>, transform_indices = @transform_1, window_bounds = array<i64: 3, 16, 32>}, {pipeline_mode = #tpu.pipeline_mode<synchronous>, transform_indices = @transform_2, window_bounds = array<i64: 1, 32>}, {pipeline_mode = #tpu.pipeline_mode<synchronous>, transform_indices = @transform_3, window_bounds = array<i64: 3, 32, 32>}, {pipeline_mode = #tpu.pipeline_mode<synchronous>, transform_indices = @transform_4, window_bounds = array<i64: 1, 32>}, {transform_indices = @transform_5, window_bounds = array<i64: 16, 32>}]} {
    %c0 = arith.constant 0 : index
    %c0_0 = arith.constant 0 : index
    %0 = vector.load %arg1[%c0, %c0_0] : memref<16x16xf32, #tpu.memory_space<vmem>>, vector<16x16xf32>
    %1 = math.tanh %0 : vector<16x16xf32>
    %c0_1 = arith.constant 0 : index
    %c0_2 = arith.constant 0 : index
    %2 = vector.load %arg3[%c0_1, %c0_2] : memref<1x32xf32, #tpu.memory_space<vmem>>, vector<1x32xf32>
    %3 = arith.truncf %1 : vector<16x16xf32> to vector<16x16xbf16>
    %c0_3 = arith.constant 0 : index
    %c0_4 = arith.constant 0 : index
    %c0_5 = arith.constant 0 : index
    %4 = vector.load %arg2[%c0_3, %c0_4, %c0_5] : memref<3x16x32xbf16, #tpu.memory_space<vmem>>, vector<1x16x32xbf16>
    %5 = vector.shape_cast %4 : vector<1x16x32xbf16> to vector<16x32xbf16>
    %cst = arith.constant dense<0.000000e+00> : vector<16x32xf32>
    %6 = tpu.matmul %3, %5, %cst {dimension_numbers = #tpu.dot_dimension_numbers<[1], [0], [0], [1], [0, 0, 1, 1], [], []>} : vector<16x16xbf16>, vector<16x32xbf16>, vector<16x32xf32> -> vector<16x32xf32>
    %7 = vector.broadcast %2 : vector<1x32xf32> to vector<16x32xf32>
    %8 = arith.addf %7, %6 : vector<16x32xf32>
    %cst_6 = arith.constant 2.000000e+00 : f32
    %9 = vector.broadcast %cst_6 : f32 to vector<16x16xf32>
    %10 = arith.mulf %9, %1 : vector<16x16xf32>
    %11 = arith.mulf %10, %1 : vector<16x16xf32>
    %cst_7 = arith.constant 1.000000e+00 : f32
    %12 = vector.broadcast %cst_7 : f32 to vector<16x16xf32>
    %13 = arith.subf %11, %12 : vector<16x16xf32>
    %14 = arith.truncf %13 : vector<16x16xf32> to vector<16x16xbf16>
    %c1 = arith.constant 1 : index
    %c0_8 = arith.constant 0 : index
    %c0_9 = arith.constant 0 : index
    %15 = vector.load %arg2[%c1, %c0_8, %c0_9] : memref<3x16x32xbf16, #tpu.memory_space<vmem>>, vector<1x16x32xbf16>
    %16 = vector.shape_cast %15 : vector<1x16x32xbf16> to vector<16x32xbf16>
    %cst_10 = arith.constant dense<0.000000e+00> : vector<16x32xf32>
    %17 = tpu.matmul %14, %16, %cst_10 {dimension_numbers = #tpu.dot_dimension_numbers<[1], [0], [0], [1], [0, 0, 1, 1], [], []>} : vector<16x16xbf16>, vector<16x32xbf16>, vector<16x32xf32> -> vector<16x32xf32>
    %18 = arith.addf %8, %17 : vector<16x32xf32>
    %cst_11 = arith.constant 2.000000e+00 : f32
    %19 = vector.broadcast %cst_11 : f32 to vector<16x16xf32>
    %20 = arith.mulf %19, %1 : vector<16x16xf32>
    %21 = arith.mulf %20, %13 : vector<16x16xf32>
    %22 = arith.subf %21, %1 : vector<16x16xf32>
    %23 = arith.truncf %22 : vector<16x16xf32> to vector<16x16xbf16>
    %c2 = arith.constant 2 : index
    %c0_12 = arith.constant 0 : index
    %c0_13 = arith.constant 0 : index
    %24 = vector.load %arg2[%c2, %c0_12, %c0_13] : memref<3x16x32xbf16, #tpu.memory_space<vmem>>, vector<1x16x32xbf16>
    %25 = vector.shape_cast %24 : vector<1x16x32xbf16> to vector<16x32xbf16>
    %cst_14 = arith.constant dense<0.000000e+00> : vector<16x32xf32>
    %26 = tpu.matmul %23, %25, %cst_14 {dimension_numbers = #tpu.dot_dimension_numbers<[1], [0], [0], [1], [0, 0, 1, 1], [], []>} : vector<16x16xbf16>, vector<16x32xbf16>, vector<16x32xf32> -> vector<16x32xf32>
    %27 = arith.addf %18, %26 : vector<16x32xf32>
    %28 = math.tanh %27 : vector<16x32xf32>
    %c0_15 = arith.constant 0 : index
    %c0_16 = arith.constant 0 : index
    %29 = vector.load %arg5[%c0_15, %c0_16] : memref<1x32xf32, #tpu.memory_space<vmem>>, vector<1x32xf32>
    %30 = arith.truncf %28 : vector<16x32xf32> to vector<16x32xbf16>
    %c0_17 = arith.constant 0 : index
    %c0_18 = arith.constant 0 : index
    %c0_19 = arith.constant 0 : index
    %31 = vector.load %arg4[%c0_17, %c0_18, %c0_19] : memref<3x32x32xbf16, #tpu.memory_space<vmem>>, vector<1x32x32xbf16>
    %32 = vector.shape_cast %31 : vector<1x32x32xbf16> to vector<32x32xbf16>
    %cst_20 = arith.constant dense<0.000000e+00> : vector<16x32xf32>
    %33 = tpu.matmul %30, %32, %cst_20 {dimension_numbers = #tpu.dot_dimension_numbers<[1], [0], [0], [1], [0, 0, 1, 1], [], []>} : vector<16x32xbf16>, vector<32x32xbf16>, vector<16x32xf32> -> vector<16x32xf32>
    %34 = vector.broadcast %29 : vector<1x32xf32> to vector<16x32xf32>
    %35 = arith.addf %34, %33 : vector<16x32xf32>
    %cst_21 = arith.constant 2.000000e+00 : f32
    %36 = vector.broadcast %cst_21 : f32 to vector<16x32xf32>
    %37 = arith.mulf %36, %28 : vector<16x32xf32>
    %38 = arith.mulf %37, %28 : vector<16x32xf32>
    %cst_22 = arith.constant 1.000000e+00 : f32
    %39 = vector.broadcast %cst_22 : f32 to vector<16x32xf32>
    %40 = arith.subf %38, %39 : vector<16x32xf32>
    %41 = arith.truncf %40 : vector<16x32xf32> to vector<16x32xbf16>
    %c1_23 = arith.constant 1 : index
    %c0_24 = arith.constant 0 : index
    %c0_25 = arith.constant 0 : index
    %42 = vector.load %arg4[%c1_23, %c0_24, %c0_25] : memref<3x32x32xbf16, #tpu.memory_space<vmem>>, vector<1x32x32xbf16>
    %43 = vector.shape_cast %42 : vector<1x32x32xbf16> to vector<32x32xbf16>
    %cst_26 = arith.constant dense<0.000000e+00> : vector<16x32xf32>
    %44 = tpu.matmul %41, %43, %cst_26 {dimension_numbers = #tpu.dot_dimension_numbers<[1], [0], [0], [1], [0, 0, 1, 1], [], []>} : vector<16x32xbf16>, vector<32x32xbf16>, vector<16x32xf32> -> vector<16x32xf32>
    %45 = arith.addf %35, %44 : vector<16x32xf32>
    %cst_27 = arith.constant 2.000000e+00 : f32
    %46 = vector.broadcast %cst_27 : f32 to vector<16x32xf32>
    %47 = arith.mulf %46, %28 : vector<16x32xf32>
    %48 = arith.mulf %47, %40 : vector<16x32xf32>
    %49 = arith.subf %48, %28 : vector<16x32xf32>
    %50 = arith.truncf %49 : vector<16x32xf32> to vector<16x32xbf16>
    %c2_28 = arith.constant 2 : index
    %c0_29 = arith.constant 0 : index
    %c0_30 = arith.constant 0 : index
    %51 = vector.load %arg4[%c2_28, %c0_29, %c0_30] : memref<3x32x32xbf16, #tpu.memory_space<vmem>>, vector<1x32x32xbf16>
    %52 = vector.shape_cast %51 : vector<1x32x32xbf16> to vector<32x32xbf16>
    %cst_31 = arith.constant dense<0.000000e+00> : vector<16x32xf32>
    %53 = tpu.matmul %50, %52, %cst_31 {dimension_numbers = #tpu.dot_dimension_numbers<[1], [0], [0], [1], [0, 0, 1, 1], [], []>} : vector<16x32xbf16>, vector<32x32xbf16>, vector<16x32xf32> -> vector<16x32xf32>
    %54 = arith.addf %45, %53 : vector<16x32xf32>
    %c0_32 = arith.constant 0 : index
    %c0_33 = arith.constant 0 : index
    %55 = vector.load %arg6[%c0_32, %c0_33] : memref<16x32xf32, #tpu.memory_space<vmem>>, vector<16x32xf32>
    tpu.vector_store %arg6[%c0_32, %c0_33], %54 {strides = array<i32>} : memref<16x32xf32, #tpu.memory_space<vmem>>, vector<16x32xf32>,
    return
  }
  func.func @transform_0(%arg0: i32) -> (i32, i32) {
    %c0_i32 = arith.constant 0 : i32
    %c0_i32_0 = arith.constant 0 : i32
    return %arg0, %c0_i32 : i32, i32
  }
  func.func @transform_1(%arg0: i32) -> (i32, i32, i32) {
    %c0_i32 = arith.constant 0 : i32
    %c0_i32_0 = arith.constant 0 : i32
    %c0_i32_1 = arith.constant 0 : i32
    %c0_i32_2 = arith.constant 0 : i32
    return %c0_i32, %c0_i32_0, %c0_i32_1 : i32, i32, i32
  }
  func.func @transform_2(%arg0: i32) -> (i32, i32) {
    %c0_i32 = arith.constant 0 : i32
    %c0_i32_0 = arith.constant 0 : i32
    %c0_i32_1 = arith.constant 0 : i32
    return %c0_i32, %c0_i32_0 : i32, i32
  }
  func.func @transform_3(%arg0: i32) -> (i32, i32, i32) {
    %c0_i32 = arith.constant 0 : i32
    %c0_i32_0 = arith.constant 0 : i32
    %c0_i32_1 = arith.constant 0 : i32
    %c0_i32_2 = arith.constant 0 : i32
    return %c0_i32, %c0_i32_0, %c0_i32_1 : i32, i32, i32
  }
  func.func @transform_4(%arg0: i32) -> (i32, i32) {
    %c0_i32 = arith.constant 0 : i32
    %c0_i32_0 = arith.constant 0 : i32
    %c0_i32_1 = arith.constant 0 : i32
    return %c0_i32, %c0_i32_0 : i32, i32
  }
  func.func @transform_5(%arg0: i32) -> (i32, i32) {
    %c0_i32 = arith.constant 0 : i32
    %c0_i32_0 = arith.constant 0 : i32
    return %arg0, %c0_i32 : i32, i32
  }
}

module attributes {stable_mosaic.version = 11 : i64} {
  func.func @_cheby_kan_kernel(%arg0: i32, %arg1: memref<16x16xf32, #tpu.memory_space<vmem>>, %arg2: memref<3x16x32xbf16, #tpu.memory_space<vmem>>, %arg3: memref<1x32xf32, #tpu.memory_space<vmem>>, %arg4: memref<3x32x32xbf16, #tpu.memory_space<vmem>>, %arg5: memref<1x32xf32, #tpu.memory_space<vmem>>, %arg6: memref<16x32xf32, #tpu.memory_space<vmem>>) attributes {dimension_semantics = [#tpu.dimension_semantics<parallel>], iteration_bounds = array<i64: 2>, scalar_prefetch = 0 : i64, scratch_operands = 0 : i64, tpu.core_type = #tpu.core_type<tc>, window_params = [{transform_indices = @transform_0, window_bounds = array<i64: 16, 16>}, {pipeline_mode = #tpu.pipeline_mode<synchronous>, transform_indices = @transform_1, window_bounds = array<i64: 3, 16, 32>}, {pipeline_mode = #tpu.pipeline_mode<synchronous>, transform_indices = @transform_2, window_bounds = array<i64: 1, 32>}, {pipeline_mode = #tpu.pipeline_mode<synchronous>, transform_indices = @transform_3, window_bounds = array<i64: 3, 32, 32>}, {pipeline_mode = #tpu.pipeline_mode<synchronous>, transform_indices = @transform_4, window_bounds = array<i64: 1, 32>}, {transform_indices = @transform_5, window_bounds = array<i64: 16, 32>}]} {
    %c0 = arith.constant 0 : index
    %c0_0 = arith.constant 0 : index
    %0 = vector.load %arg1[%c0, %c0_0] : memref<16x16xf32, #tpu.memory_space<vmem>>, vector<16x16xf32>
    %1 = math.tanh %0 : vector<16x16xf32>
    %c0_1 = arith.constant 0 : index
    %c0_2 = arith.constant 0 : index
    %2 = vector.load %arg3[%c0_1, %c0_2] : memref<1x32xf32, #tpu.memory_space<vmem>>, vector<1x32xf32>
    %3 = arith.truncf %1 : vector<16x16xf32> to vector<16x16xbf16>
    %c0_3 = arith.constant 0 : index
    %c0_4 = arith.constant 0 : index
    %c0_5 = arith.constant 0 : index
    %4 = vector.load %arg2[%c0_3, %c0_4, %c0_5] : memref<3x16x32xbf16, #tpu.memory_space<vmem>>, vector<1x16x32xbf16>
    %5 = vector.shape_cast %4 : vector<1x16x32xbf16> to vector<16x32xbf16>
    %cst = arith.constant dense<0.000000e+00> : vector<16x32xf32>
    %6 = tpu.matmul %3, %5, %cst {dimension_numbers = #tpu.dot_dimension_numbers<[1], [0], [0], [1], [0, 0, 1, 1], [], []>} : vector<16x16xbf16>, vector<16x32xbf16>, vector<16x32xf32> -> vector<16x32xf32>
    %7 = vector.broadcast %2 : vector<1x32xf32> to vector<16x32xf32>
    %8 = arith.addf %7, %6 : vector<16x32xf32>
    %cst_6 = arith.constant 2.000000e+00 : f32
    %9 = vector.broadcast %cst_6 : f32 to vector<16x16xf32>
    %10 = arith.mulf %9, %1 : vector<16x16xf32>
    %11 = arith.mulf %10, %1 : vector<16x16xf32>
    %cst_7 = arith.constant 1.000000e+00 : f32
    %12 = vector.broadcast %cst_7 : f32 to vector<16x16xf32>
    %13 = arith.subf %11, %12 : vector<16x16xf32>
    %14 = arith.truncf %13 : vector<16x16xf32> to vector<16x16xbf16>
    %c1 = arith.constant 1 : index
    %c0_8 = arith.constant 0 : index
    %c0_9 = arith.constant 0 : index
    %15 = vector.load %arg2[%c1, %c0_8, %c0_9] : memref<3x16x32xbf16, #tpu.memory_space<vmem>>, vector<1x16x32xbf16>
    %16 = vector.shape_cast %15 : vector<1x16x32xbf16> to vector<16x32xbf16>
    %cst_10 = arith.constant dense<0.000000e+00> : vector<16x32xf32>
    %17 = tpu.matmul %14, %16, %cst_10 {dimension_numbers = #tpu.dot_dimension_numbers<[1], [0], [0], [1], [0, 0, 1, 1], [], []>} : vector<16x16xbf16>, vector<16x32xbf16>, vector<16x32xf32> -> vector<16x32xf32>
    %18 = arith.addf %8, %17 : vector<16x32xf32>
    %cst_11 = arith.constant 2.000000e+00 : f32
    %19 = vector.broadcast %cst_11 : f32 to vector<16x16xf32>
    %20 = arith.mulf %19, %1 : vector<16x16xf32>
    %21 = arith.mulf %20, %13 : vector<16x16xf32>
    %22 = arith.subf %21, %1 : vector<16x16xf32>
    %23 = arith.truncf %22 : vector<16x16xf32> to vector<16x16xbf16>
    %c2 = arith.constant 2 : index
    %c0_12 = arith.constant 0 : index
    %c0_13 = arith.constant 0 : index
    %24 = vector.load %arg2[%c2, %c0_12, %c0_13] : memref<3x16x32xbf16, #tpu.memory_space<vmem>>, vector<1x16x32xbf16>
    %25 = vector.shape_cast %24 : vector<1x16x32xbf16> to vector<16x32xbf16>
    %cst_14 = arith.constant dense<0.000000e+00> : vector<16x32xf32>
    %26 = tpu.matmul %23, %25, %cst_14 {dimension_numbers = #tpu.dot_dimension_numbers<[1], [0], [0], [1], [0, 0, 1, 1], [], []>} : vector<16x16xbf16>, vector<16x32xbf16>, vector<16x32xf32> -> vector<16x32xf32>
    %27 = arith.addf %18, %26 : vector<16x32xf32>
    %28 = math.tanh %27 : vector<16x32xf32>
    %c0_15 = arith.constant 0 : index
    %c0_16 = arith.constant 0 : index
    %29 = vector.load %arg5[%c0_15, %c0_16] : memref<1x32xf32, #tpu.memory_space<vmem>>, vector<1x32xf32>
    %30 = arith.truncf %28 : vector<16x32xf32> to vector<16x32xbf16>
    %c0_17 = arith.constant 0 : index
    %c0_18 = arith.constant 0 : index
    %c0_19 = arith.constant 0 : index
    %31 = vector.load %arg4[%c0_17, %c0_18, %c0_19] : memref<3x32x32xbf16, #tpu.memory_space<vmem>>, vector<1x32x32xbf16>
    %32 = vector.shape_cast %31 : vector<1x32x32xbf16> to vector<32x32xbf16>
    %cst_20 = arith.constant dense<0.000000e+00> : vector<16x32xf32>
    %33 = tpu.matmul %30, %32, %cst_20 {dimension_numbers = #tpu.dot_dimension_numbers<[1], [0], [0], [1], [0, 0, 1, 1], [], []>} : vector<16x32xbf16>, vector<32x32xbf16>, vector<16x32xf32> -> vector<16x32xf32>
    %34 = vector.broadcast %29 : vector<1x32xf32> to vector<16x32xf32>
    %35 = arith.addf %34, %33 : vector<16x32xf32>
    %cst_21 = arith.constant 2.000000e+00 : f32
    %36 = vector.broadcast %cst_21 : f32 to vector<16x32xf32>
    %37 = arith.mulf %36, %28 : vector<16x32xf32>
    %38 = arith.mulf %37, %28 : vector<16x32xf32>
    %cst_22 = arith.constant 1.000000e+00 : f32
    %39 = vector.broadcast %cst_22 : f32 to vector<16x32xf32>
    %40 = arith.subf %38, %39 : vector<16x32xf32>
    %41 = arith.truncf %40 : vector<16x32xf32> to vector<16x32xbf16>
    %c1_23 = arith.constant 1 : index
    %c0_24 = arith.constant 0 : index
    %c0_25 = arith.constant 0 : index
    %42 = vector.load %arg4[%c1_23, %c0_24, %c0_25] : memref<3x32x32xbf16, #tpu.memory_space<vmem>>, vector<1x32x32xbf16>
    %43 = vector.shape_cast %42 : vector<1x32x32xbf16> to vector<32x32xbf16>
    %cst_26 = arith.constant dense<0.000000e+00> : vector<16x32xf32>
    %44 = tpu.matmul %41, %43, %cst_26 {dimension_numbers = #tpu.dot_dimension_numbers<[1], [0], [0], [1], [0, 0, 1, 1], [], []>} : vector<16x32xbf16>, vector<32x32xbf16>, vector<16x32xf32> -> vector<16x32xf32>
    %45 = arith.addf %35, %44 : vector<16x32xf32>
    %cst_27 = arith.constant 2.000000e+00 : f32
    %46 = vector.broadcast %cst_27 : f32 to vector<16x32xf32>
    %47 = arith.mulf %46, %28 : vector<16x32xf32>
    %48 = arith.mulf %47, %40 : vector<16x32xf32>
    %49 = arith.subf %48, %28 : vector<16x32xf32>
    %50 = arith.truncf %49 : vector<16x32xf32> to vector<16x32xbf16>
    %c2_28 = arith.constant 2 : index
    %c0_29 = arith.constant 0 : index
    %c0_30 = arith.constant 0 : index
    %51 = vector.load %arg4[%c2_28, %c0_29, %c0_30] : memref<3x32x32xbf16, #tpu.memory_space<vmem>>, vector<1x32x32xbf16>
    %52 = vector.shape_cast %51 : vector<1x32x32xbf16> to vector<32x32xbf16>
    %cst_31 = arith.constant dense<0.000000e+00> : vector<16x32xf32>
    %53 = tpu.matmul %50, %52, %cst_31 {dimension_numbers = #tpu.dot_dimension_numbers<[1], [0], [0], [1], [0, 0, 1, 1], [], []>} : vector<16x32xbf16>, vector<32x32xbf16>, vector<16x32xf32> -> vector<16x32xf32>
    %54 = arith.addf %45, %53 : vector<16x32xf32>
    %c0_32 = arith.constant 0 : index
    %c0_33 = arith.constant 0 : index
    %55 = vector.load %arg6[%c0_32, %c0_33] : memref<16x32xf32, #tpu.memory_space<vmem>>, vector<16x32xf32>
    tpu.vector_store %arg6[%c0_32, %c0_33], %54 {strides = array<i32>} : memref<16x32xf32, #tpu.memory_space<vmem>>, vector<16x32xf32>,
    return
  }
  func.func @transform_0(%arg0: i32) -> (i32, i32) {
    %c0_i32 = arith.constant 0 : i32
    %c0_i32_0 = arith.constant 0 : i32
    return %arg0, %c0_i32 : i32, i32
  }
  func.func @transform_1(%arg0: i32) -> (i32, i32, i32) {
    %c0_i32 = arith.constant 0 : i32
    %c0_i32_0 = arith.constant 0 : i32
    %c0_i32_1 = arith.constant 0 : i32
    %c0_i32_2 = arith.constant 0 : i32
    return %c0_i32, %c0_i32_0, %c0_i32_1 : i32, i32, i32
  }
  func.func @transform_2(%arg0: i32) -> (i32, i32) {
    %c0_i32 = arith.constant 0 : i32
    %c0_i32_0 = arith.constant 0 : i32
    %c0_i32_1 = arith.constant 0 : i32
    return %c0_i32, %c0_i32_0 : i32, i32
  }
  func.func @transform_3(%arg0: i32) -> (i32, i32, i32) {
    %c0_i32 = arith.constant 0 : i32
    %c0_i32_0 = arith.constant 0 : i32
    %c0_i32_1 = arith.constant 0 : i32
    %c0_i32_2 = arith.constant 0 : i32
    return %c0_i32, %c0_i32_0, %c0_i32_1 : i32, i32, i32
  }
  func.func @transform_4(%arg0: i32) -> (i32, i32) {
    %c0_i32 = arith.constant 0 : i32
    %c0_i32_0 = arith.constant 0 : i32
    %c0_i32_1 = arith.constant 0 : i32
    return %c0_i32, %c0_i32_0 : i32, i32
  }
  func.func @transform_5(%arg0: i32) -> (i32, i32) {
    %c0_i32 = arith.constant 0 : i32
    %c0_i32_0 = arith.constant 0 : i32
    return %arg0, %c0_i32 : i32, i32
  }
}

</mosaic_0001>

<llo_original>
// kernel: tpu_custom_call.1
$region0: #{tpu_custom_call.1}
  #allocation0 [shape = 'u32[]', space=smem, size = 0x4, offset = 0x4, fixed_abs, tag = 'smem constant byte address 0x4 - core index']
  #allocation1 [shape = 'u32[144,128]{1,0:T(1,128)}', space=vmem, size = 0x12000, scoped, tag = 'internal scratch']
  %s0 = inlined_call_operand.vmem [shape: f32[32,16], index: 0, kind: input, shape index: {}]
  %s1 = inlined_call_operand.hbm [shape: bf16[3,16,32], index: 1, kind: input, shape index: {}]
  %s2 = inlined_call_operand.vmem [shape: f32[1,32], index: 2, kind: input, shape index: {}]
  %s3 = inlined_call_operand.vmem [shape: bf16[3,32,32], index: 3, kind: input, shape index: {}]
  %s4 = inlined_call_operand.vmem [shape: f32[1,32], index: 4, kind: input, shape index: {}]
  %s5 = inlined_call_operand.hbm [shape: f32[32,32], index: 5, kind: output, shape index: {}]
  %s6 = sld [smem:[#allocation0]]
  $region57: #{tpu_custom_call.1} parent=0
    _
  %s8 = ssub.s32 1, %s6
  %s9 = scalar_select 0, %s8, %s6
  $region1: #{tpu_custom_call.1} parent=0
    #allocation2 [shape = 'u8[12288]{0}', space=vmem, size = 0x3000, scoped, tag = 'input window, operand 1, single buffered']
    #allocation3 [shape = 's32[2]{0}', space=sflag, size = 0x8, scoped, tag = 'scoped memory for tpu_custom_call.1']
    #allocation4 [shape = 's32[2]{0}', space=sflag, size = 0x8, scoped, tag = 'scoped memory for tpu_custom_call.1']
    #allocation5 [shape = 'u8[16384]{0}', space=vmem, size = 0x4000, scoped, tag = 'output window, operand 0']
    %10 = vsyncpa [#allocation3], 0
    %11 = vsyncpa [#allocation4], 0
    %s12 = scalar_lea.sflag [#allocation4], 1
    %13 = vsyncpa %s12, 0
    loop: start=0, step=1, limit=4
    $region2: #{tpu_custom_call.1} parent=1 // loop_pre_header
      _
    $region3: #{tpu_custom_call.1} parent=1 // loop_header
      %s15 = sphi 0, %s19
      %p16 = scmp.ge.s32.totalorder %s15, 4
      %s25 = sphi 0, %s27
      %s28 = sphi 0, %s25
      %s29 = sphi 0, %s28
      %s45 = sphi 0, %s29
      %s49 = sphi 0, %s49
      %s51 = sphi 0, %s49
      %s52 = sphi 0, %s51
      %s66 = sphi 0, %s52
      %s70 = sphi 0, %s70
      %s72 = sphi 0, %s70
      %s73 = sphi 0, %s72
      %s87 = sphi 0, %s73
      %s91 = sphi 0, %s91
      %s93 = sphi 0, %s91
      %s94 = sphi 0, %s93
      %s108 = sphi 0, %s94
      %s112 = sphi 0, %s112
      %s114 = sphi 0, %s112
      %s115 = sphi 0, %s114
      %s129 = sphi 0, %s115
      %s135 = sphi 0, %s137
      %s138 = sphi 0, %s135
      %s139 = sphi 0, %s138
      %s155 = sphi 0, %s139
    $region4: #{tpu_custom_call.1} parent=1 // loop_header_branch
      %18 = sbr.rel (%p16) target = $region8
    $region5: #{tpu_custom_call.1} parent=1 // loop_body
      %s20 = ssub.s32 %s15, 1
      %s21 = ssub.s32 %s15, 2
      %s22 = sadd.s32 %s15, 1
      %s23 = ssub.s32 %s15, %s22
      %p24 = scmp.eq.s32.totalorder %s23, 0
      %s26 = sadd.s32 %s25, 1
      %s27 = scalar_select %p24, %s25, %s26
      %p30 = pneg %p24
      %p31 = scmp.eq.s32.totalorder %s15, 1
      %p32 = por %p30, %p31
      %p33 = scmp.ne.s32.totalorder %s25, %s28
      %p34 = scmp.eq.s32.totalorder %s15, 0
      %p35 = por %p33, %p34
      %p36 = scmp.ne.s32.totalorder %s25, %s28
      %p37 = scmp.eq.s32.totalorder %s20, 1
      %p38 = por %p36, %p37
      %p39 = scmp.ne.s32.totalorder %s28, %s29
      %p40 = scmp.eq.s32.totalorder %s20, 0
      %p41 = por %p39, %p40
      %p42 = scmp.ne.s32.totalorder %s28, %s29
      %p43 = scmp.eq.s32.totalorder %s21, 1
      %p44 = por %p42, %p43
      %p46 = scmp.ne.s32.totalorder %s29, %s45
      %p47 = scmp.eq.s32.totalorder %s21, 0
      %p48 = por %p46, %p47
      %s50 = sadd.s32 %s49, 1
      %p53 = scmp.eq.s32.totalorder %s15, 1
      %p54 = scmp.ne.s32.totalorder %s49, %s51
      %p55 = scmp.eq.s32.totalorder %s15, 0
      %p56 = por %p54, %p55
      %p57 = scmp.ne.s32.totalorder %s49, %s51
      %p58 = scmp.eq.s32.totalorder %s20, 1
      %p59 = por %p57, %p58
      %p60 = scmp.ne.s32.totalorder %s51, %s52
      %p61 = scmp.eq.s32.totalorder %s20, 0
      %p62 = por %p60, %p61
      %p63 = scmp.ne.s32.totalorder %s51, %s52
      %p64 = scmp.eq.s32.totalorder %s21, 1
      %p65 = por %p63, %p64
      %p67 = scmp.ne.s32.totalorder %s52, %s66
      %p68 = scmp.eq.s32.totalorder %s21, 0
      %p69 = por %p67, %p68
      %s71 = sadd.s32 %s70, 1
      %p74 = scmp.eq.s32.totalorder %s15, 1
      %p75 = scmp.ne.s32.totalorder %s70, %s72
      %p76 = scmp.eq.s32.totalorder %s15, 0
      %p77 = por %p75, %p76
      %p78 = scmp.ne.s32.totalorder %s70, %s72
      %p79 = scmp.eq.s32.totalorder %s20, 1
      %p80 = por %p78, %p79
      %p81 = scmp.ne.s32.totalorder %s72, %s73
      %p82 = scmp.eq.s32.totalorder %s20, 0
      %p83 = por %p81, %p82
      %p84 = scmp.ne.s32.totalorder %s72, %s73
      %p85 = scmp.eq.s32.totalorder %s21, 1
      %p86 = por %p84, %p85
      %p88 = scmp.ne.s32.totalorder %s73, %s87
      %p89 = scmp.eq.s32.totalorder %s21, 0
      %p90 = por %p88, %p89
      %s92 = sadd.s32 %s91, 1
      %p95 = scmp.eq.s32.totalorder %s15, 1
      %p96 = scmp.ne.s32.totalorder %s91, %s93
      %p97 = scmp.eq.s32.totalorder %s15, 0
      %p98 = por %p96, %p97
      %p99 = scmp.ne.s32.totalorder %s91, %s93
      %p100 = scmp.eq.s32.totalorder %s20, 1
      %p101 = por %p99, %p100
      %p102 = scmp.ne.s32.totalorder %s93, %s94
      %p103 = scmp.eq.s32.totalorder %s20, 0
      %p104 = por %p102, %p103
      %p105 = scmp.ne.s32.totalorder %s93, %s94
      %p106 = scmp.eq.s32.totalorder %s21, 1
      %p107 = por %p105, %p106
      %p109 = scmp.ne.s32.totalorder %s94, %s108
      %p110 = scmp.eq.s32.totalorder %s21, 0
      %p111 = por %p109, %p110
      %s113 = sadd.s32 %s112, 1
      %p116 = scmp.eq.s32.totalorder %s15, 1
      %p117 = scmp.ne.s32.totalorder %s112, %s114
      %p118 = scmp.eq.s32.totalorder %s15, 0
      %p119 = por %p117, %p118
      %p120 = scmp.ne.s32.totalorder %s112, %s114
      %p121 = scmp.eq.s32.totalorder %s20, 1
      %p122 = por %p120, %p121
      %p123 = scmp.ne.s32.totalorder %s114, %s115
      %p124 = scmp.eq.s32.totalorder %s20, 0
      %p125 = por %p123, %p124
      %p126 = scmp.ne.s32.totalorder %s114, %s115
      %p127 = scmp.eq.s32.totalorder %s21, 1
      %p128 = por %p126, %p127
      %p130 = scmp.ne.s32.totalorder %s115, %s129
      %p131 = scmp.eq.s32.totalorder %s21, 0
      %p132 = por %p130, %p131
      %s133 = ssub.s32 %s15, %s22
      %p134 = scmp.eq.s32.totalorder %s133, 0
      %s136 = sadd.s32 %s135, 1
      %s137 = scalar_select %p134, %s135, %s136
      %p140 = pneg %p134
      %p141 = scmp.eq.s32.totalorder %s15, 1
      %p142 = por %p140, %p141
      %p143 = scmp.ne.s32.totalorder %s135, %s138
      %p144 = scmp.eq.s32.totalorder %s15, 0
      %p145 = por %p143, %p144
      %p146 = scmp.ne.s32.totalorder %s135, %s138
      %p147 = scmp.eq.s32.totalorder %s20, 1
      %p148 = por %p146, %p147
      %p149 = scmp.ne.s32.totalorder %s138, %s139
      %p150 = scmp.eq.s32.totalorder %s20, 0
      %p151 = por %p149, %p150
      %p152 = scmp.ne.s32.totalorder %s138, %s139
      %p153 = scmp.eq.s32.totalorder %s21, 1
      %p154 = por %p152, %p153
      %p156 = scmp.ne.s32.totalorder %s139, %s155
      %p157 = scmp.eq.s32.totalorder %s21, 0
      %p158 = por %p156, %p157
      %p159 = scmp.le.s32.totalorder 1, %s15
      %p160 = scmp.lt.s32.totalorder %s15, 3
      %p161 = pnand %p159, %p160
      %p162 = pneg %p161
      // Predicated region
      $region9: #{tpu_custom_call.1} parent=5 // pred_check
        _
      $region10: #{tpu_custom_call.1} parent=5 // pred_check_branch
        %164 = sbr.rel (%p161) target = $region12
      $region11: #{tpu_custom_call.1} parent=5 // pred_region
        %s165 = ssub.s32 %s15, 1
        // Predicated region
        $region13: #{tpu_custom_call.1} parent=11 // pred_check
          %p166 = pneg %p62
        $region14: #{tpu_custom_call.1} parent=11 // pred_check_branch
          %168 = sbr.rel (%p166) target = $region16
        $region15: #{tpu_custom_call.1} parent=11 // pred_region
          %s170 = ssub.s32 384, 384
          %171 = vsyncadd [#allocation3], %s170
          %s172 = sshll.u32 [#allocation2], 4
          %s173 = int_to_ptr.vmem [resolvable:$true] %s172
          %178 = dma.hbm_to_vmem [thread:$0]  %s1, 384, %s173, [#allocation3], 64, 64, 4
        $region16: #{tpu_custom_call.1} parent=11 // pred_fallthru
          _
        // Predicated region
        $region17: #{tpu_custom_call.1} parent=11 // pred_check
          %p179 = pneg %p83
        $region18: #{tpu_custom_call.1} parent=11 // pred_check_branch
          %181 = sbr.rel (%p179) target = $region20
        $region19: #{tpu_custom_call.1} parent=11 // pred_region
          _
        $region20: #{tpu_custom_call.1} parent=11 // pred_fallthru
          _
        // Predicated region
        $region21: #{tpu_custom_call.1} parent=11 // pred_check
          %p182 = pneg %p104
        $region22: #{tpu_custom_call.1} parent=11 // pred_check_branch
          %184 = sbr.rel (%p182) target = $region24
        $region23: #{tpu_custom_call.1} parent=11 // pred_region
          _
        $region24: #{tpu_custom_call.1} parent=11 // pred_fallthru
          _
        // Predicated region
        $region25: #{tpu_custom_call.1} parent=11 // pred_check
          %p185 = pneg %p125
        $region26: #{tpu_custom_call.1} parent=11 // pred_check_branch
          %187 = sbr.rel (%p185) target = $region28
        $region27: #{tpu_custom_call.1} parent=11 // pred_region
          _
        $region28: #{tpu_custom_call.1} parent=11 // pred_fallthru
          _
      $region12: #{tpu_custom_call.1} parent=5 // pred_fallthru
        _
      %p188 = scmp.lt.s32.totalorder %s15, 2
      // Predicated region
      $region29: #{tpu_custom_call.1} parent=5 // pred_check
        %p189 = pneg %p188
      $region30: #{tpu_custom_call.1} parent=5 // pred_check_branch
        %191 = sbr.rel (%p189) target = $region32
      $region31: #{tpu_custom_call.1} parent=5 // pred_region
        // Predicated region
        $region33: #{tpu_custom_call.1} parent=31 // pred_check
          %p192 = pneg %p35
        $region34: #{tpu_custom_call.1} parent=31 // pred_check_branch
          %194 = sbr.rel (%p192) target = $region36
        $region35: #{tpu_custom_call.1} parent=31 // pred_region
          %s195 = smul.u32 2, %s15
          %p196 = scmp.lt.s32.totalorder %s195, 3
          %s197 = scalar_select %p196, %s195, 3
          %s198 = smul.addr %s197, 8
          %s199 = scalar_lea.vmem %s0, %s198
          %s200 = smul.u32 2, %s15
        $region36: #{tpu_custom_call.1} parent=31 // pred_fallthru
          _
      $region32: #{tpu_custom_call.1} parent=5 // pred_fallthru
        _
      %p201 = scmp.le.s32.totalorder 1, %s15
      %p202 = scmp.lt.s32.totalorder %s15, 3
      %p203 = pnand %p201, %p202
      %p204 = pneg %p203
      // Predicated region
      $region37: #{tpu_custom_call.1} parent=5 // pred_check
        _
      $region38: #{tpu_custom_call.1} parent=5 // pred_check_branch
        %206 = sbr.rel (%p203) target = $region40
      $region39: #{tpu_custom_call.1} parent=5 // pred_region
        %s207 = ssub.s32 %s15, 1
        // Predicated region
        $region41: #{tpu_custom_call.1} parent=39 // pred_check
          %p208 = pneg %p62
        $region42: #{tpu_custom_call.1} parent=39 // pred_check_branch
          %210 = sbr.rel (%p208) target = $region44
        $region43: #{tpu_custom_call.1} parent=39 // pred_region
          %211 = dma.done [#allocation3], 384
        $region44: #{tpu_custom_call.1} parent=39 // pred_fallthru
          _
        %s212 = smul.u32 2, %s20
        %p213 = scmp.lt.s32.totalorder %s212, 3
        %s214 = scalar_select %p213, %s212, 3
        %s215 = smul.addr %s214, 8
        %s216 = scalar_lea.vmem %s0, %s215
        %p217 = pneg %p41
        %p218 = pneg %p38
        %p219 = pneg %p62
        %p220 = pneg %p59
        %p221 = pneg %p83
        %p222 = pneg %p80
        %p223 = pneg %p104
        %p224 = pneg %p101
        %p225 = pneg %p125
        %p226 = pneg %p122
        %p227 = pneg %p151
        %p228 = pneg %p148
        %s229 = sand.u32 %s138, 1
        %s230 = scalar_lea.sflag [#allocation4], %s229
        %s231 = sand.u32 %s138, 1
        %s232 = smul.addr %s231, 16
        %s233 = scalar_lea.vmem [#allocation5], %s232
        %s234 = smul.u32 2, %s20
        %p235 = scmp.lt.s32.totalorder %s234, 3
        %s236 = scalar_select %p235, %s234, 3
        %s237 = smul.addr %s236, 8
        %s238 = scalar_lea.vmem %s0, %s237
        %s239 = smul.u32 2, %s20
        %s240 = smul.u32 2, %s20
        %v242 = vld [vmem:[%s238] sm:$0xff]
        %v243 = vld [vmem:[%s238 + $0x8] sm:$0xff]
        %v244 = vtanh.pop %v242
        %v245 = vtanh.pop %v243
        %v246 = vld [vmem:[%s2] sm:$0x1]
        %v247 = vpack.c.bf16 %v245, %v244
        %v248 = vld [vmem:[#allocation2] sm:$0xf]
        %v249 = vld [vmem:[#allocation2 + $0x4] sm:$0xf]
        %v252 = vunpack.c.l.b16 %v248
        %v253 = vunpack.c.l.b16 %v249
        %v254 = vpack.c.b16 %v253, %v252
        %vm256 = vcmask 130048
        %v258 = vsel %vm256, %v247, 0
        %260 = vmatprep.subr.bf16.mxu0 0
        %261 = vmatpush1.bf16.msra.mxu0 0
        %262 = vmatprep.subr.bf16.mxu0 0
        %263 = vmatpush1.bf16.msra.mxu0 0
        %264 = vmatprep.subr.bf16.mxu0 0
        %265 = vmatpush1.bf16.msra.mxu0 0
        %266 = vmatprep.subr.bf16.mxu0 0
        %267 = vmatpush1.bf16.msra.mxu0 0
        %268 = vmatprep.subr.bf16.mxu0 0
        %269 = vmatpush1.bf16.msra.mxu0 0
        %270 = vmatprep.subr.bf16.mxu0 0
        %271 = vmatpush1.bf16.msra.mxu0 0
        %272 = vmatprep.subr.bf16.mxu0 0
        %273 = vmatpush1.bf16.msra.mxu0 0
        %274 = vmatprep.subr.bf16.mxu0 0
        %275 = vmatpush1.bf16.msra.mxu0 %v254
        %276 = vmatprep.subr.bf16.mxu0 0
        %277 = vmatpush2.bf16.msra.mxu0 0
        %278 = vmatprep.subr.bf16.mxu0 0
        %279 = vmatpush2.bf16.msra.mxu0 0
        %280 = vmatprep.subr.bf16.mxu0 0
        %281 = vmatpush2.bf16.msra.mxu0 0
        %282 = vmatprep.subr.bf16.mxu0 0
        %283 = vmatpush2.bf16.msra.mxu0 0
        %284 = vmatprep.subr.bf16.mxu0 0
        %285 = vmatpush2.bf16.msra.mxu0 0
        %286 = vmatprep.subr.bf16.mxu0 0
        %287 = vmatpush2.bf16.msra.mxu0 0
        %288 = vmatprep.subr.bf16.mxu0 0
        %289 = vmatpush2.bf16.msra.mxu0 0
        %290 = vmatprep.subr.bf16.mxu0 0
        %291 = vmatpush2.bf16.msra.mxu0 0
        %292 = vmatprep.mubr.bf16.mxu0 0
        %293 = vmatmul.mubr.bf16.gmra.mxu0 %v258
        %v294 = vpop.f32.mrf.mxu0
        %v295 = vadd.f32 0.0, %v294
        %v296 = vpop.f32.mrf.mxu0
        %v297 = vpop.f32.mrf.mxu0
        %v298 = vadd.f32 0.0, %v297
        %v299 = vpop.f32.mrf.mxu0
        %300 = vdwg.mxu0
        %v302 = vlaneseq
        %v303 = vshrl.u32 %v302, 7
        %v304 = vsub.s32 0, %v303
        %v305 = vrot.slane %v246, %v304
        %v307 = vadd.f32 %v305, %v295
        %v308 = vadd.f32 %v305, %v298
        %v309 = vmul.f32 %v244, 2.0
        %v310 = vmul.f32 %v245, 2.0
        %v311 = vmul.f32 %v309, %v244
        %v312 = vmul.f32 %v310, %v245
        %v313 = vsub.f32 %v311, 1.0
        %v314 = vsub.f32 %v312, 1.0
        %v315 = vpack.c.bf16 %v314, %v313
        %s316 = scalar_lea.vmem [#allocation2], 8
        %v317 = vld [vmem:[%s316] sm:$0xf]
        %v318 = vld [vmem:[%s316 + $0x4] sm:$0xf]
        %v321 = vunpack.c.l.b16 %v317
        %v322 = vunpack.c.l.b16 %v318
        %v323 = vpack.c.b16 %v322, %v321
        %v326 = vsel %vm256, %v315, 0
        %328 = vmatprep.subr.bf16.mxu0 0
        %329 = vmatpush1.bf16.msra.mxu0 0
        %330 = vmatprep.subr.bf16.mxu0 0
        %331 = vmatpush1.bf16.msra.mxu0 0
        %332 = vmatprep.subr.bf16.mxu0 0
        %333 = vmatpush1.bf16.msra.mxu0 0
        %334 = vmatprep.subr.bf16.mxu0 0
        %335 = vmatpush1.bf16.msra.mxu0 0
        %336 = vmatprep.subr.bf16.mxu0 0
        %337 = vmatpush1.bf16.msra.mxu0 0
        %338 = vmatprep.subr.bf16.mxu0 0
        %339 = vmatpush1.bf16.msra.mxu0 0
        %340 = vmatprep.subr.bf16.mxu0 0
        %341 = vmatpush1.bf16.msra.mxu0 0
        %342 = vmatprep.subr.bf16.mxu0 0
        %343 = vmatpush1.bf16.msra.mxu0 %v323
        %344 = vmatprep.subr.bf16.mxu0 0
        %345 = vmatpush2.bf16.msra.mxu0 0
        %346 = vmatprep.subr.bf16.mxu0 0
        %347 = vmatpush2.bf16.msra.mxu0 0
        %348 = vmatprep.subr.bf16.mxu0 0
        %349 = vmatpush2.bf16.msra.mxu0 0
        %350 = vmatprep.subr.bf16.mxu0 0
        %351 = vmatpush2.bf16.msra.mxu0 0
        %352 = vmatprep.subr.bf16.mxu0 0
        %353 = vmatpush2.bf16.msra.mxu0 0
        %354 = vmatprep.subr.bf16.mxu0 0
        %355 = vmatpush2.bf16.msra.mxu0 0
        %356 = vmatprep.subr.bf16.mxu0 0
        %357 = vmatpush2.bf16.msra.mxu0 0
        %358 = vmatprep.subr.bf16.mxu0 0
        %359 = vmatpush2.bf16.msra.mxu0 0
        %360 = vmatprep.mubr.bf16.mxu0 0
        %361 = vmatmul.mubr.bf16.gmra.mxu0 %v326
        %v362 = vpop.f32.mrf.mxu0
        %v363 = vadd.f32 0.0, %v362
        %v364 = vpop.f32.mrf.mxu0
        %v365 = vpop.f32.mrf.mxu0
        %v366 = vadd.f32 0.0, %v365
        %v367 = vpop.f32.mrf.mxu0
        %368 = vdwg.mxu0
        %v369 = vadd.f32 %v307, %v363
        %v370 = vadd.f32 %v308, %v366
        %v371 = vmul.f32 %v309, %v313
        %v372 = vmul.f32 %v310, %v314
        %v373 = vsub.f32 %v371, %v244
        %v374 = vsub.f32 %v372, %v245
        %v375 = vpack.c.bf16 %v374, %v373
        %s376 = scalar_lea.vmem [#allocation2], 16
        %v377 = vld [vmem:[%s376] sm:$0xf]
        %v378 = vld [vmem:[%s376 + $0x4] sm:$0xf]
        %v381 = vunpack.c.l.b16 %v377
        %v382 = vunpack.c.l.b16 %v378
        %v383 = vpack.c.b16 %v382, %v381
        %v386 = vsel %vm256, %v375, 0
        %388 = vmatprep.subr.bf16.mxu0 0
        %389 = vmatpush1.bf16.msra.mxu0 0
        %390 = vmatprep.subr.bf16.mxu0 0
        %391 = vmatpush1.bf16.msra.mxu0 0
        %392 = vmatprep.subr.bf16.mxu0 0
        %393 = vmatpush1.bf16.msra.mxu0 0
        %394 = vmatprep.subr.bf16.mxu0 0
        %395 = vmatpush1.bf16.msra.mxu0 0
        %396 = vmatprep.subr.bf16.mxu0 0
        %397 = vmatpush1.bf16.msra.mxu0 0
        %398 = vmatprep.subr.bf16.mxu0 0
        %399 = vmatpush1.bf16.msra.mxu0 0
        %400 = vmatprep.subr.bf16.mxu0 0
        %401 = vmatpush1.bf16.msra.mxu0 0
        %402 = vmatprep.subr.bf16.mxu0 0
        %403 = vmatpush1.bf16.msra.mxu0 %v383
        %404 = vmatprep.subr.bf16.mxu0 0
        %405 = vmatpush2.bf16.msra.mxu0 0
        %406 = vmatprep.subr.bf16.mxu0 0
        %407 = vmatpush2.bf16.msra.mxu0 0
        %408 = vmatprep.subr.bf16.mxu0 0
        %409 = vmatpush2.bf16.msra.mxu0 0
        %410 = vmatprep.subr.bf16.mxu0 0
        %411 = vmatpush2.bf16.msra.mxu0 0
        %412 = vmatprep.subr.bf16.mxu0 0
        %413 = vmatpush2.bf16.msra.mxu0 0
        %414 = vmatprep.subr.bf16.mxu0 0
        %415 = vmatpush2.bf16.msra.mxu0 0
        %416 = vmatprep.subr.bf16.mxu0 0
        %417 = vmatpush2.bf16.msra.mxu0 0
        %418 = vmatprep.subr.bf16.mxu0 0
        %419 = vmatpush2.bf16.msra.mxu0 0
        %420 = vmatprep.mubr.bf16.mxu0 0
        %421 = vmatmul.mubr.bf16.gmra.mxu0 %v386
        %v422 = vpop.f32.mrf.mxu0
        %v423 = vadd.f32 0.0, %v422
        %v424 = vpop.f32.mrf.mxu0
        %v425 = vpop.f32.mrf.mxu0
        %v426 = vadd.f32 0.0, %v425
        %v427 = vpop.f32.mrf.mxu0
        %428 = vdwg.mxu0
        %v429 = vadd.f32 %v369, %v423
        %v430 = vadd.f32 %v370, %v426
        %v431 = vtanh.pop %v429
        %v432 = vtanh.pop %v430
        %v433 = vld [vmem:[%s4] sm:$0x1]
        %v434 = vpack.c.bf16 %v432, %v431
        %v435 = vld [vmem:[%s3] sm:$0xf]
        %v436 = vld [vmem:[%s3 + $0x4] sm:$0xf]
        %v437 = vld [vmem:[%s3 + $0x8] sm:$0xf]
        %v438 = vld [vmem:[%s3 + $0xc] sm:$0xf]
        %v443 = vunpack.c.l.b16 %v435
        %v444 = vunpack.c.l.b16 %v436
        %v445 = vunpack.c.l.b16 %v437
        %v446 = vunpack.c.l.b16 %v438
        %v447 = vpack.c.b16 %v444, %v443
        %v448 = vpack.c.b16 %v446, %v445
        %vm451 = vcmask 261120
        %v453 = vsel %vm451, %v434, 0
        %455 = vmatprep.subr.bf16.mxu0 0
        %456 = vmatpush1.bf16.msra.mxu0 0
        %457 = vmatprep.subr.bf16.mxu0 0
        %458 = vmatpush1.bf16.msra.mxu0 0
        %459 = vmatprep.subr.bf16.mxu0 0
        %460 = vmatpush1.bf16.msra.mxu0 0
        %461 = vmatprep.subr.bf16.mxu0 0
        %462 = vmatpush1.bf16.msra.mxu0 0
        %463 = vmatprep.subr.bf16.mxu0 0
        %464 = vmatpush1.bf16.msra.mxu0 0
        %465 = vmatprep.subr.bf16.mxu0 0
        %466 = vmatpush1.bf16.msra.mxu0 0
        %467 = vmatprep.subr.bf16.mxu0 0
        %468 = vmatpush1.bf16.msra.mxu0 %v448
        %469 = vmatprep.subr.bf16.mxu0 0
        %470 = vmatpush1.bf16.msra.mxu0 %v447
        %471 = vmatprep.subr.bf16.mxu0 0
        %472 = vmatpush2.bf16.msra.mxu0 0
        %473 = vmatprep.subr.bf16.mxu0 0
        %474 = vmatpush2.bf16.msra.mxu0 0
        %475 = vmatprep.subr.bf16.mxu0 0
        %476 = vmatpush2.bf16.msra.mxu0 0
        %477 = vmatprep.subr.bf16.mxu0 0
        %478 = vmatpush2.bf16.msra.mxu0 0
        %479 = vmatprep.subr.bf16.mxu0 0
        %480 = vmatpush2.bf16.msra.mxu0 0
        %481 = vmatprep.subr.bf16.mxu0 0
        %482 = vmatpush2.bf16.msra.mxu0 0
        %483 = vmatprep.subr.bf16.mxu0 0
        %484 = vmatpush2.bf16.msra.mxu0 0
        %485 = vmatprep.subr.bf16.mxu0 0
        %486 = vmatpush2.bf16.msra.mxu0 0
        %487 = vmatprep.mubr.bf16.mxu0 0
        %488 = vmatmul.mubr.bf16.gmra.mxu0 %v453
        %v489 = vpop.f32.mrf.mxu0
        %v490 = vadd.f32 0.0, %v489
        %v491 = vpop.f32.mrf.mxu0
        %v492 = vpop.f32.mrf.mxu0
        %v493 = vadd.f32 0.0, %v492
        %v494 = vpop.f32.mrf.mxu0
        %495 = vdwg.mxu0
        %v497 = vlaneseq
        %v498 = vshrl.u32 %v497, 7
        %v499 = vsub.s32 0, %v498
        %v500 = vrot.slane %v433, %v499
        %v502 = vadd.f32 %v500, %v490
        %v503 = vadd.f32 %v500, %v493
        %v504 = vmul.f32 %v431, 2.0
        %v505 = vmul.f32 %v432, 2.0
        %v506 = vmul.f32 %v504, %v431
        %v507 = vmul.f32 %v505, %v432
        %v508 = vsub.f32 %v506, 1.0
        %v509 = vsub.f32 %v507, 1.0
        %v510 = vpack.c.bf16 %v509, %v508
        %s511 = scalar_lea.vmem %s3, 16
        %v512 = vld [vmem:[%s511] sm:$0xf]
        %v513 = vld [vmem:[%s511 + $0x4] sm:$0xf]
        %v514 = vld [vmem:[%s511 + $0x8] sm:$0xf]
        %v515 = vld [vmem:[%s511 + $0xc] sm:$0xf]
        %v520 = vunpack.c.l.b16 %v512
        %v521 = vunpack.c.l.b16 %v513
        %v522 = vunpack.c.l.b16 %v514
        %v523 = vunpack.c.l.b16 %v515
        %v524 = vpack.c.b16 %v521, %v520
        %v525 = vpack.c.b16 %v523, %v522
        %v529 = vsel %vm451, %v510, 0
        %531 = vmatprep.subr.bf16.mxu0 0
        %532 = vmatpush1.bf16.msra.mxu0 0
        %533 = vmatprep.subr.bf16.mxu0 0
        %534 = vmatpush1.bf16.msra.mxu0 0
        %535 = vmatprep.subr.bf16.mxu0 0
        %536 = vmatpush1.bf16.msra.mxu0 0
        %537 = vmatprep.subr.bf16.mxu0 0
        %538 = vmatpush1.bf16.msra.mxu0 0
        %539 = vmatprep.subr.bf16.mxu0 0
        %540 = vmatpush1.bf16.msra.mxu0 0
        %541 = vmatprep.subr.bf16.mxu0 0
        %542 = vmatpush1.bf16.msra.mxu0 0
        %543 = vmatprep.subr.bf16.mxu0 0
        %544 = vmatpush1.bf16.msra.mxu0 %v525
        %545 = vmatprep.subr.bf16.mxu0 0
        %546 = vmatpush1.bf16.msra.mxu0 %v524
        %547 = vmatprep.subr.bf16.mxu0 0
        %548 = vmatpush2.bf16.msra.mxu0 0
        %549 = vmatprep.subr.bf16.mxu0 0
        %550 = vmatpush2.bf16.msra.mxu0 0
        %551 = vmatprep.subr.bf16.mxu0 0
        %552 = vmatpush2.bf16.msra.mxu0 0
        %553 = vmatprep.subr.bf16.mxu0 0
        %554 = vmatpush2.bf16.msra.mxu0 0
        %555 = vmatprep.subr.bf16.mxu0 0
        %556 = vmatpush2.bf16.msra.mxu0 0
        %557 = vmatprep.subr.bf16.mxu0 0
        %558 = vmatpush2.bf16.msra.mxu0 0
        %559 = vmatprep.subr.bf16.mxu0 0
        %560 = vmatpush2.bf16.msra.mxu0 0
        %561 = vmatprep.subr.bf16.mxu0 0
        %562 = vmatpush2.bf16.msra.mxu0 0
        %563 = vmatprep.mubr.bf16.mxu0 0
        %564 = vmatmul.mubr.bf16.gmra.mxu0 %v529
        %v565 = vpop.f32.mrf.mxu0
        %v566 = vadd.f32 0.0, %v565
        %v567 = vpop.f32.mrf.mxu0
        %v568 = vpop.f32.mrf.mxu0
        %v569 = vadd.f32 0.0, %v568
        %v570 = vpop.f32.mrf.mxu0
        %571 = vdwg.mxu0
        %v572 = vadd.f32 %v502, %v566
        %v573 = vadd.f32 %v503, %v569
        %v574 = vmul.f32 %v504, %v508
        %v575 = vmul.f32 %v505, %v509
        %v576 = vsub.f32 %v574, %v431
        %v577 = vsub.f32 %v575, %v432
        %v578 = vpack.c.bf16 %v577, %v576
        %s579 = scalar_lea.vmem %s3, 32
        %v580 = vld [vmem:[%s579] sm:$0xf]
        %v581 = vld [vmem:[%s579 + $0x4] sm:$0xf]
        %v582 = vld [vmem:[%s579 + $0x8] sm:$0xf]
        %v583 = vld [vmem:[%s579 + $0xc] sm:$0xf]
        %v588 = vunpack.c.l.b16 %v580
        %v589 = vunpack.c.l.b16 %v581
        %v590 = vunpack.c.l.b16 %v582
        %v591 = vunpack.c.l.b16 %v583
        %v592 = vpack.c.b16 %v589, %v588
        %v593 = vpack.c.b16 %v591, %v590
        %v597 = vsel %vm451, %v578, 0
        %599 = vmatprep.subr.bf16.mxu0 0
        %600 = vmatpush1.bf16.msra.mxu0 0
        %601 = vmatprep.subr.bf16.mxu0 0
        %602 = vmatpush1.bf16.msra.mxu0 0
        %603 = vmatprep.subr.bf16.mxu0 0
        %604 = vmatpush1.bf16.msra.mxu0 0
        %605 = vmatprep.subr.bf16.mxu0 0
        %606 = vmatpush1.bf16.msra.mxu0 0
        %607 = vmatprep.subr.bf16.mxu0 0
        %608 = vmatpush1.bf16.msra.mxu0 0
        %609 = vmatprep.subr.bf16.mxu0 0
        %610 = vmatpush1.bf16.msra.mxu0 0
        %611 = vmatprep.subr.bf16.mxu0 0
        %612 = vmatpush1.bf16.msra.mxu0 %v593
        %613 = vmatprep.subr.bf16.mxu0 0
        %614 = vmatpush1.bf16.msra.mxu0 %v592
        %615 = vmatprep.subr.bf16.mxu0 0
        %616 = vmatpush2.bf16.msra.mxu0 0
        %617 = vmatprep.subr.bf16.mxu0 0
        %618 = vmatpush2.bf16.msra.mxu0 0
        %619 = vmatprep.subr.bf16.mxu0 0
        %620 = vmatpush2.bf16.msra.mxu0 0
        %621 = vmatprep.subr.bf16.mxu0 0
        %622 = vmatpush2.bf16.msra.mxu0 0
        %623 = vmatprep.subr.bf16.mxu0 0
        %624 = vmatpush2.bf16.msra.mxu0 0
        %625 = vmatprep.subr.bf16.mxu0 0
        %626 = vmatpush2.bf16.msra.mxu0 0
        %627 = vmatprep.subr.bf16.mxu0 0
        %628 = vmatpush2.bf16.msra.mxu0 0
        %629 = vmatprep.subr.bf16.mxu0 0
        %630 = vmatpush2.bf16.msra.mxu0 0
        %631 = vmatprep.mubr.bf16.mxu0 0
        %632 = vmatmul.mubr.bf16.gmra.mxu0 %v597
        %v633 = vpop.f32.mrf.mxu0
        %v634 = vadd.f32 0.0, %v633
        %v635 = vpop.f32.mrf.mxu0
        %v636 = vpop.f32.mrf.mxu0
        %v637 = vadd.f32 0.0, %v636
        %v638 = vpop.f32.mrf.mxu0
        %639 = vdwg.mxu0
        %v640 = vadd.f32 %v572, %v634
        %v641 = vadd.f32 %v573, %v637
        %642 = vst.msk [vmem:[%s233] sm:$0xff] %vm451, %v640
        %643 = vst.msk [vmem:[%s233 + $0x8] sm:$0xff] %vm451, %v641
        %s644 = sand.u32 %s138, 1
        %s645 = scalar_lea.sflag [#allocation4], %s644
        %s646 = sand.u32 %s138, 1
        %s647 = smul.addr %s646, 16
        %s648 = scalar_lea.vmem [#allocation5], %s647
        // Predicated region
        $region45: #{tpu_custom_call.1} parent=39 // pred_check
          %p649 = pneg %p148
        $region46: #{tpu_custom_call.1} parent=39 // pred_check_branch
          %651 = sbr.rel (%p649) target = $region48
        $region47: #{tpu_custom_call.1} parent=39 // pred_region
          %s652 = smul.u32 2, %s20
          %s654 = ssub.s32 256, 256
          %655 = vsyncadd %s645, %s654
          %s656 = smul.addr %s652, 128
          %s657 = scalar_lea.hbm %s5, %s656
          %s658 = sshll.u32 %s648, 4
          %s659 = int_to_ptr.vmem [resolvable:$true] %s658
          %664 = dma.vmem_to_hbm [thread:$0]  %s659, 256, %s657, %s645, 128, 128, 8
        $region48: #{tpu_custom_call.1} parent=39 // pred_fallthru
          _
      $region40: #{tpu_custom_call.1} parent=5 // pred_fallthru
        _
      %p665 = scmp.le.s32.totalorder 2, %s15
      // Predicated region
      $region49: #{tpu_custom_call.1} parent=5 // pred_check
        %p666 = pneg %p665
      $region50: #{tpu_custom_call.1} parent=5 // pred_check_branch
        %668 = sbr.rel (%p666) target = $region52
      $region51: #{tpu_custom_call.1} parent=5 // pred_region
        %s669 = ssub.s32 %s15, 2
        // Predicated region
        $region53: #{tpu_custom_call.1} parent=51 // pred_check
          %p670 = pneg %p154
        $region54: #{tpu_custom_call.1} parent=51 // pred_check_branch
          %672 = sbr.rel (%p670) target = $region56
        $region55: #{tpu_custom_call.1} parent=51 // pred_region
          %s673 = sand.u32 %s139, 1
          %s674 = scalar_lea.sflag [#allocation4], %s673
          %s675 = sand.u32 %s139, 1
          %s676 = smul.addr %s675, 16
          %s677 = scalar_lea.vmem [#allocation5], %s676
          %678 = dma.done %s674, 256
        $region56: #{tpu_custom_call.1} parent=51 // pred_fallthru
          _
      $region52: #{tpu_custom_call.1} parent=5 // pred_fallthru
        _
    $region6: #{tpu_custom_call.1} parent=1 // loop_footer
      %s19 = sadd.s32 1, %s15
    $region7: #{tpu_custom_call.1} parent=1 // loop_footer_branch
      %14 = sbr.rel target = $region3
    $region8: #{tpu_custom_call.1} parent=1 // loop_exit
      _
    %679 = vsyncpa [#allocation3], 1
    %s680 = scalar_lea.sflag [#allocation3], 1
    %681 = vsyncpa %s680, 1
    %682 = vsyncpa [#allocation4], 1
    %s683 = scalar_lea.sflag [#allocation4], 1
    %684 = vsyncpa %s683, 1

// kernel: tpu_custom_call.1
$region0: #{tpu_custom_call.1}
  #allocation0 [shape = 'u32[]', space=smem, size = 0x4, offset = 0x4, fixed_abs, tag = 'smem constant byte address 0x4 - core index']
  #allocation1 [shape = 'u32[144,128]{1,0:T(1,128)}', space=vmem, size = 0x12000, scoped, tag = 'internal scratch']
  %s0 = inlined_call_operand.vmem [shape: f32[32,16], index: 0, kind: input, shape index: {}]
  %s1 = inlined_call_operand.hbm [shape: bf16[3,16,32], index: 1, kind: input, shape index: {}]
  %s2 = inlined_call_operand.vmem [shape: f32[1,32], index: 2, kind: input, shape index: {}]
  %s3 = inlined_call_operand.vmem [shape: bf16[3,32,32], index: 3, kind: input, shape index: {}]
  %s4 = inlined_call_operand.vmem [shape: f32[1,32], index: 4, kind: input, shape index: {}]
  %s5 = inlined_call_operand.hbm [shape: f32[32,32], index: 5, kind: output, shape index: {}]
  %s6 = sld [smem:[#allocation0]]
  $region57: #{tpu_custom_call.1} parent=0
    _
  %s8 = ssub.s32 1, %s6
  %s9 = scalar_select 0, %s8, %s6
  $region1: #{tpu_custom_call.1} parent=0
    #allocation2 [shape = 'u8[12288]{0}', space=vmem, size = 0x3000, scoped, tag = 'input window, operand 1, single buffered']
    #allocation3 [shape = 's32[2]{0}', space=sflag, size = 0x8, scoped, tag = 'scoped memory for tpu_custom_call.1']
    #allocation4 [shape = 's32[2]{0}', space=sflag, size = 0x8, scoped, tag = 'scoped memory for tpu_custom_call.1']
    #allocation5 [shape = 'u8[16384]{0}', space=vmem, size = 0x4000, scoped, tag = 'output window, operand 0']
    %10 = vsyncpa [#allocation3], 0
    %11 = vsyncpa [#allocation4], 0
    %s12 = scalar_lea.sflag [#allocation4], 1
    %13 = vsyncpa %s12, 0
    loop: start=0, step=1, limit=4
    $region2: #{tpu_custom_call.1} parent=1 // loop_pre_header
      _
    $region3: #{tpu_custom_call.1} parent=1 // loop_header
      %s15 = sphi 0, %s19
      %p16 = scmp.ge.s32.totalorder %s15, 4
      %s25 = sphi 0, %s27
      %s28 = sphi 0, %s25
      %s29 = sphi 0, %s28
      %s45 = sphi 0, %s29
      %s49 = sphi 0, %s49
      %s51 = sphi 0, %s49
      %s52 = sphi 0, %s51
      %s66 = sphi 0, %s52
      %s70 = sphi 0, %s70
      %s72 = sphi 0, %s70
      %s73 = sphi 0, %s72
      %s87 = sphi 0, %s73
      %s91 = sphi 0, %s91
      %s93 = sphi 0, %s91
      %s94 = sphi 0, %s93
      %s108 = sphi 0, %s94
      %s112 = sphi 0, %s112
      %s114 = sphi 0, %s112
      %s115 = sphi 0, %s114
      %s129 = sphi 0, %s115
      %s135 = sphi 0, %s137
      %s138 = sphi 0, %s135
      %s139 = sphi 0, %s138
      %s155 = sphi 0, %s139
    $region4: #{tpu_custom_call.1} parent=1 // loop_header_branch
      %18 = sbr.rel (%p16) target = $region8
    $region5: #{tpu_custom_call.1} parent=1 // loop_body
      %s20 = ssub.s32 %s15, 1
      %s21 = ssub.s32 %s15, 2
      %s22 = sadd.s32 %s15, 1
      %s23 = ssub.s32 %s15, %s22
      %p24 = scmp.eq.s32.totalorder %s23, 0
      %s26 = sadd.s32 %s25, 1
      %s27 = scalar_select %p24, %s25, %s26
      %p30 = pneg %p24
      %p31 = scmp.eq.s32.totalorder %s15, 1
      %p32 = por %p30, %p31
      %p33 = scmp.ne.s32.totalorder %s25, %s28
      %p34 = scmp.eq.s32.totalorder %s15, 0
      %p35 = por %p33, %p34
      %p36 = scmp.ne.s32.totalorder %s25, %s28
      %p37 = scmp.eq.s32.totalorder %s20, 1
      %p38 = por %p36, %p37
      %p39 = scmp.ne.s32.totalorder %s28, %s29
      %p40 = scmp.eq.s32.totalorder %s20, 0
      %p41 = por %p39, %p40
      %p42 = scmp.ne.s32.totalorder %s28, %s29
      %p43 = scmp.eq.s32.totalorder %s21, 1
      %p44 = por %p42, %p43
      %p46 = scmp.ne.s32.totalorder %s29, %s45
      %p47 = scmp.eq.s32.totalorder %s21, 0
      %p48 = por %p46, %p47
      %s50 = sadd.s32 %s49, 1
      %p53 = scmp.eq.s32.totalorder %s15, 1
      %p54 = scmp.ne.s32.totalorder %s49, %s51
      %p55 = scmp.eq.s32.totalorder %s15, 0
      %p56 = por %p54, %p55
      %p57 = scmp.ne.s32.totalorder %s49, %s51
      %p58 = scmp.eq.s32.totalorder %s20, 1
      %p59 = por %p57, %p58
      %p60 = scmp.ne.s32.totalorder %s51, %s52
      %p61 = scmp.eq.s32.totalorder %s20, 0
      %p62 = por %p60, %p61
      %p63 = scmp.ne.s32.totalorder %s51, %s52
      %p64 = scmp.eq.s32.totalorder %s21, 1
      %p65 = por %p63, %p64
      %p67 = scmp.ne.s32.totalorder %s52, %s66
      %p68 = scmp.eq.s32.totalorder %s21, 0
      %p69 = por %p67, %p68
      %s71 = sadd.s32 %s70, 1
      %p74 = scmp.eq.s32.totalorder %s15, 1
      %p75 = scmp.ne.s32.totalorder %s70, %s72
      %p76 = scmp.eq.s32.totalorder %s15, 0
      %p77 = por %p75, %p76
      %p78 = scmp.ne.s32.totalorder %s70, %s72
      %p79 = scmp.eq.s32.totalorder %s20, 1
      %p80 = por %p78, %p79
      %p81 = scmp.ne.s32.totalorder %s72, %s73
      %p82 = scmp.eq.s32.totalorder %s20, 0
      %p83 = por %p81, %p82
      %p84 = scmp.ne.s32.totalorder %s72, %s73
      %p85 = scmp.eq.s32.totalorder %s21, 1
      %p86 = por %p84, %p85
      %p88 = scmp.ne.s32.totalorder %s73, %s87
      %p89 = scmp.eq.s32.totalorder %s21, 0
      %p90 = por %p88, %p89
      %s92 = sadd.s32 %s91, 1
      %p95 = scmp.eq.s32.totalorder %s15, 1
      %p96 = scmp.ne.s32.totalorder %s91, %s93
      %p97 = scmp.eq.s32.totalorder %s15, 0
      %p98 = por %p96, %p97
      %p99 = scmp.ne.s32.totalorder %s91, %s93
      %p100 = scmp.eq.s32.totalorder %s20, 1
      %p101 = por %p99, %p100
      %p102 = scmp.ne.s32.totalorder %s93, %s94
      %p103 = scmp.eq.s32.totalorder %s20, 0
      %p104 = por %p102, %p103
      %p105 = scmp.ne.s32.totalorder %s93, %s94
      %p106 = scmp.eq.s32.totalorder %s21, 1
      %p107 = por %p105, %p106
      %p109 = scmp.ne.s32.totalorder %s94, %s108
      %p110 = scmp.eq.s32.totalorder %s21, 0
      %p111 = por %p109, %p110
      %s113 = sadd.s32 %s112, 1
      %p116 = scmp.eq.s32.totalorder %s15, 1
      %p117 = scmp.ne.s32.totalorder %s112, %s114
      %p118 = scmp.eq.s32.totalorder %s15, 0
      %p119 = por %p117, %p118
      %p120 = scmp.ne.s32.totalorder %s112, %s114
      %p121 = scmp.eq.s32.totalorder %s20, 1
      %p122 = por %p120, %p121
      %p123 = scmp.ne.s32.totalorder %s114, %s115
      %p124 = scmp.eq.s32.totalorder %s20, 0
      %p125 = por %p123, %p124
      %p126 = scmp.ne.s32.totalorder %s114, %s115
      %p127 = scmp.eq.s32.totalorder %s21, 1
      %p128 = por %p126, %p127
      %p130 = scmp.ne.s32.totalorder %s115, %s129
      %p131 = scmp.eq.s32.totalorder %s21, 0
      %p132 = por %p130, %p131
      %s133 = ssub.s32 %s15, %s22
      %p134 = scmp.eq.s32.totalorder %s133, 0
      %s136 = sadd.s32 %s135, 1
      %s137 = scalar_select %p134, %s135, %s136
      %p140 = pneg %p134
      %p141 = scmp.eq.s32.totalorder %s15, 1
      %p142 = por %p140, %p141
      %p143 = scmp.ne.s32.totalorder %s135, %s138
      %p144 = scmp.eq.s32.totalorder %s15, 0
      %p145 = por %p143, %p144
      %p146 = scmp.ne.s32.totalorder %s135, %s138
      %p147 = scmp.eq.s32.totalorder %s20, 1
      %p148 = por %p146, %p147
      %p149 = scmp.ne.s32.totalorder %s138, %s139
      %p150 = scmp.eq.s32.totalorder %s20, 0
      %p151 = por %p149, %p150
      %p152 = scmp.ne.s32.totalorder %s138, %s139
      %p153 = scmp.eq.s32.totalorder %s21, 1
      %p154 = por %p152, %p153
      %p156 = scmp.ne.s32.totalorder %s139, %s155
      %p157 = scmp.eq.s32.totalorder %s21, 0
      %p158 = por %p156, %p157
      %p159 = scmp.le.s32.totalorder 1, %s15
      %p160 = scmp.lt.s32.totalorder %s15, 3
      %p161 = pnand %p159, %p160
      %p162 = pneg %p161
      // Predicated region
      $region9: #{tpu_custom_call.1} parent=5 // pred_check
        _
      $region10: #{tpu_custom_call.1} parent=5 // pred_check_branch
        %164 = sbr.rel (%p161) target = $region12
      $region11: #{tpu_custom_call.1} parent=5 // pred_region
        %s165 = ssub.s32 %s15, 1
        // Predicated region
        $region13: #{tpu_custom_call.1} parent=11 // pred_check
          %p166 = pneg %p62
        $region14: #{tpu_custom_call.1} parent=11 // pred_check_branch
          %168 = sbr.rel (%p166) target = $region16
        $region15: #{tpu_custom_call.1} parent=11 // pred_region
          %s170 = ssub.s32 384, 384
          %171 = vsyncadd [#allocation3], %s170
          %s172 = sshll.u32 [#allocation2], 4
          %s173 = int_to_ptr.vmem [resolvable:$true] %s172
          %178 = dma.hbm_to_vmem [thread:$0]  %s1, 384, %s173, [#allocation3], 64, 64, 4
        $region16: #{tpu_custom_call.1} parent=11 // pred_fallthru
          _
        // Predicated region
        $region17: #{tpu_custom_call.1} parent=11 // pred_check
          %p179 = pneg %p83
        $region18: #{tpu_custom_call.1} parent=11 // pred_check_branch
          %181 = sbr.rel (%p179) target = $region20
        $region19: #{tpu_custom_call.1} parent=11 // pred_region
          _
        $region20: #{tpu_custom_call.1} parent=11 // pred_fallthru
          _
        // Predicated region
        $region21: #{tpu_custom_call.1} parent=11 // pred_check
          %p182 = pneg %p104
        $region22: #{tpu_custom_call.1} parent=11 // pred_check_branch
          %184 = sbr.rel (%p182) target = $region24
        $region23: #{tpu_custom_call.1} parent=11 // pred_region
          _
        $region24: #{tpu_custom_call.1} parent=11 // pred_fallthru
          _
        // Predicated region
        $region25: #{tpu_custom_call.1} parent=11 // pred_check
          %p185 = pneg %p125
        $region26: #{tpu_custom_call.1} parent=11 // pred_check_branch
          %187 = sbr.rel (%p185) target = $region28
        $region27: #{tpu_custom_call.1} parent=11 // pred_region
          _
        $region28: #{tpu_custom_call.1} parent=11 // pred_fallthru
          _
      $region12: #{tpu_custom_call.1} parent=5 // pred_fallthru
        _
      %p188 = scmp.lt.s32.totalorder %s15, 2
      // Predicated region
      $region29: #{tpu_custom_call.1} parent=5 // pred_check
        %p189 = pneg %p188
      $region30: #{tpu_custom_call.1} parent=5 // pred_check_branch
        %191 = sbr.rel (%p189) target = $region32
      $region31: #{tpu_custom_call.1} parent=5 // pred_region
        // Predicated region
        $region33: #{tpu_custom_call.1} parent=31 // pred_check
          %p192 = pneg %p35
        $region34: #{tpu_custom_call.1} parent=31 // pred_check_branch
          %194 = sbr.rel (%p192) target = $region36
        $region35: #{tpu_custom_call.1} parent=31 // pred_region
          %s195 = smul.u32 2, %s15
          %p196 = scmp.lt.s32.totalorder %s195, 3
          %s197 = scalar_select %p196, %s195, 3
          %s198 = smul.addr %s197, 8
          %s199 = scalar_lea.vmem %s0, %s198
          %s200 = smul.u32 2, %s15
        $region36: #{tpu_custom_call.1} parent=31 // pred_fallthru
          _
      $region32: #{tpu_custom_call.1} parent=5 // pred_fallthru
        _
      %p201 = scmp.le.s32.totalorder 1, %s15
      %p202 = scmp.lt.s32.totalorder %s15, 3
      %p203 = pnand %p201, %p202
      %p204 = pneg %p203
      // Predicated region
      $region37: #{tpu_custom_call.1} parent=5 // pred_check
        _
      $region38: #{tpu_custom_call.1} parent=5 // pred_check_branch
        %206 = sbr.rel (%p203) target = $region40
      $region39: #{tpu_custom_call.1} parent=5 // pred_region
        %s207 = ssub.s32 %s15, 1
        // Predicated region
        $region41: #{tpu_custom_call.1} parent=39 // pred_check
          %p208 = pneg %p62
        $region42: #{tpu_custom_call.1} parent=39 // pred_check_branch
          %210 = sbr.rel (%p208) target = $region44
        $region43: #{tpu_custom_call.1} parent=39 // pred_region
          %211 = dma.done [#allocation3], 384
        $region44: #{tpu_custom_call.1} parent=39 // pred_fallthru
          _
        %s212 = smul.u32 2, %s20
        %p213 = scmp.lt.s32.totalorder %s212, 3
        %s214 = scalar_select %p213, %s212, 3
        %s215 = smul.addr %s214, 8
        %s216 = scalar_lea.vmem %s0, %s215
        %p217 = pneg %p41
        %p218 = pneg %p38
        %p219 = pneg %p62
        %p220 = pneg %p59
        %p221 = pneg %p83
        %p222 = pneg %p80
        %p223 = pneg %p104
        %p224 = pneg %p101
        %p225 = pneg %p125
        %p226 = pneg %p122
        %p227 = pneg %p151
        %p228 = pneg %p148
        %s229 = sand.u32 %s138, 1
        %s230 = scalar_lea.sflag [#allocation4], %s229
        %s231 = sand.u32 %s138, 1
        %s232 = smul.addr %s231, 16
        %s233 = scalar_lea.vmem [#allocation5], %s232
        %s234 = smul.u32 2, %s20
        %p235 = scmp.lt.s32.totalorder %s234, 3
        %s236 = scalar_select %p235, %s234, 3
        %s237 = smul.addr %s236, 8
        %s238 = scalar_lea.vmem %s0, %s237
        %s239 = smul.u32 2, %s20
        %s240 = smul.u32 2, %s20
        %v242 = vld [vmem:[%s238] sm:$0xff]
        %v243 = vld [vmem:[%s238 + $0x8] sm:$0xff]
        %v244 = vtanh.pop %v242
        %v245 = vtanh.pop %v243
        %v246 = vld [vmem:[%s2] sm:$0x1]
        %v247 = vpack.c.bf16 %v245, %v244
        %v248 = vld [vmem:[#allocation2] sm:$0xf]
        %v249 = vld [vmem:[#allocation2 + $0x4] sm:$0xf]
        %v252 = vunpack.c.l.b16 %v248
        %v253 = vunpack.c.l.b16 %v249
        %v254 = vpack.c.b16 %v253, %v252
        %vm256 = vcmask 130048
        %v258 = vsel %vm256, %v247, 0
        %260 = vmatprep.subr.bf16.mxu0 0
        %261 = vmatpush1.bf16.msra.mxu0 0
        %262 = vmatprep.subr.bf16.mxu0 0
        %263 = vmatpush1.bf16.msra.mxu0 0
        %264 = vmatprep.subr.bf16.mxu0 0
        %265 = vmatpush1.bf16.msra.mxu0 0
        %266 = vmatprep.subr.bf16.mxu0 0
        %267 = vmatpush1.bf16.msra.mxu0 0
        %268 = vmatprep.subr.bf16.mxu0 0
        %269 = vmatpush1.bf16.msra.mxu0 0
        %270 = vmatprep.subr.bf16.mxu0 0
        %271 = vmatpush1.bf16.msra.mxu0 0
        %272 = vmatprep.subr.bf16.mxu0 0
        %273 = vmatpush1.bf16.msra.mxu0 0
        %274 = vmatprep.subr.bf16.mxu0 0
        %275 = vmatpush1.bf16.msra.mxu0 %v254
        %276 = vmatprep.subr.bf16.mxu0 0
        %277 = vmatpush2.bf16.msra.mxu0 0
        %278 = vmatprep.subr.bf16.mxu0 0
        %279 = vmatpush2.bf16.msra.mxu0 0
        %280 = vmatprep.subr.bf16.mxu0 0
        %281 = vmatpush2.bf16.msra.mxu0 0
        %282 = vmatprep.subr.bf16.mxu0 0
        %283 = vmatpush2.bf16.msra.mxu0 0
        %284 = vmatprep.subr.bf16.mxu0 0
        %285 = vmatpush2.bf16.msra.mxu0 0
        %286 = vmatprep.subr.bf16.mxu0 0
        %287 = vmatpush2.bf16.msra.mxu0 0
        %288 = vmatprep.subr.bf16.mxu0 0
        %289 = vmatpush2.bf16.msra.mxu0 0
        %290 = vmatprep.subr.bf16.mxu0 0
        %291 = vmatpush2.bf16.msra.mxu0 0
        %292 = vmatprep.mubr.bf16.mxu0 0
        %293 = vmatmul.mubr.bf16.gmra.mxu0 %v258
        %v294 = vpop.f32.mrf.mxu0
        %v295 = vadd.f32 0.0, %v294
        %v296 = vpop.f32.mrf.mxu0
        %v297 = vpop.f32.mrf.mxu0
        %v298 = vadd.f32 0.0, %v297
        %v299 = vpop.f32.mrf.mxu0
        %300 = vdwg.mxu0
        %v302 = vlaneseq
        %v303 = vshrl.u32 %v302, 7
        %v304 = vsub.s32 0, %v303
        %v305 = vrot.slane %v246, %v304
        %v307 = vadd.f32 %v305, %v295
        %v308 = vadd.f32 %v305, %v298
        %v309 = vmul.f32 %v244, 2.0
        %v310 = vmul.f32 %v245, 2.0
        %v311 = vmul.f32 %v309, %v244
        %v312 = vmul.f32 %v310, %v245
        %v313 = vsub.f32 %v311, 1.0
        %v314 = vsub.f32 %v312, 1.0
        %v315 = vpack.c.bf16 %v314, %v313
        %s316 = scalar_lea.vmem [#allocation2], 8
        %v317 = vld [vmem:[%s316] sm:$0xf]
        %v318 = vld [vmem:[%s316 + $0x4] sm:$0xf]
        %v321 = vunpack.c.l.b16 %v317
        %v322 = vunpack.c.l.b16 %v318
        %v323 = vpack.c.b16 %v322, %v321
        %v326 = vsel %vm256, %v315, 0
        %328 = vmatprep.subr.bf16.mxu0 0
        %329 = vmatpush1.bf16.msra.mxu0 0
        %330 = vmatprep.subr.bf16.mxu0 0
        %331 = vmatpush1.bf16.msra.mxu0 0
        %332 = vmatprep.subr.bf16.mxu0 0
        %333 = vmatpush1.bf16.msra.mxu0 0
        %334 = vmatprep.subr.bf16.mxu0 0
        %335 = vmatpush1.bf16.msra.mxu0 0
        %336 = vmatprep.subr.bf16.mxu0 0
        %337 = vmatpush1.bf16.msra.mxu0 0
        %338 = vmatprep.subr.bf16.mxu0 0
        %339 = vmatpush1.bf16.msra.mxu0 0
        %340 = vmatprep.subr.bf16.mxu0 0
        %341 = vmatpush1.bf16.msra.mxu0 0
        %342 = vmatprep.subr.bf16.mxu0 0
        %343 = vmatpush1.bf16.msra.mxu0 %v323
        %344 = vmatprep.subr.bf16.mxu0 0
        %345 = vmatpush2.bf16.msra.mxu0 0
        %346 = vmatprep.subr.bf16.mxu0 0
        %347 = vmatpush2.bf16.msra.mxu0 0
        %348 = vmatprep.subr.bf16.mxu0 0
        %349 = vmatpush2.bf16.msra.mxu0 0
        %350 = vmatprep.subr.bf16.mxu0 0
        %351 = vmatpush2.bf16.msra.mxu0 0
        %352 = vmatprep.subr.bf16.mxu0 0
        %353 = vmatpush2.bf16.msra.mxu0 0
        %354 = vmatprep.subr.bf16.mxu0 0
        %355 = vmatpush2.bf16.msra.mxu0 0
        %356 = vmatprep.subr.bf16.mxu0 0
        %357 = vmatpush2.bf16.msra.mxu0 0
        %358 = vmatprep.subr.bf16.mxu0 0
        %359 = vmatpush2.bf16.msra.mxu0 0
        %360 = vmatprep.mubr.bf16.mxu0 0
        %361 = vmatmul.mubr.bf16.gmra.mxu0 %v326
        %v362 = vpop.f32.mrf.mxu0
        %v363 = vadd.f32 0.0, %v362
        %v364 = vpop.f32.mrf.mxu0
        %v365 = vpop.f32.mrf.mxu0
        %v366 = vadd.f32 0.0, %v365
        %v367 = vpop.f32.mrf.mxu0
        %368 = vdwg.mxu0
        %v369 = vadd.f32 %v307, %v363
        %v370 = vadd.f32 %v308, %v366
        %v371 = vmul.f32 %v309, %v313
        %v372 = vmul.f32 %v310, %v314
        %v373 = vsub.f32 %v371, %v244
        %v374 = vsub.f32 %v372, %v245
        %v375 = vpack.c.bf16 %v374, %v373
        %s376 = scalar_lea.vmem [#allocation2], 16
        %v377 = vld [vmem:[%s376] sm:$0xf]
        %v378 = vld [vmem:[%s376 + $0x4] sm:$0xf]
        %v381 = vunpack.c.l.b16 %v377
        %v382 = vunpack.c.l.b16 %v378
        %v383 = vpack.c.b16 %v382, %v381
        %v386 = vsel %vm256, %v375, 0
        %388 = vmatprep.subr.bf16.mxu0 0
        %389 = vmatpush1.bf16.msra.mxu0 0
        %390 = vmatprep.subr.bf16.mxu0 0
        %391 = vmatpush1.bf16.msra.mxu0 0
        %392 = vmatprep.subr.bf16.mxu0 0
        %393 = vmatpush1.bf16.msra.mxu0 0
        %394 = vmatprep.subr.bf16.mxu0 0
        %395 = vmatpush1.bf16.msra.mxu0 0
        %396 = vmatprep.subr.bf16.mxu0 0
        %397 = vmatpush1.bf16.msra.mxu0 0
        %398 = vmatprep.subr.bf16.mxu0 0
        %399 = vmatpush1.bf16.msra.mxu0 0
        %400 = vmatprep.subr.bf16.mxu0 0
        %401 = vmatpush1.bf16.msra.mxu0 0
        %402 = vmatprep.subr.bf16.mxu0 0
        %403 = vmatpush1.bf16.msra.mxu0 %v383
        %404 = vmatprep.subr.bf16.mxu0 0
        %405 = vmatpush2.bf16.msra.mxu0 0
        %406 = vmatprep.subr.bf16.mxu0 0
        %407 = vmatpush2.bf16.msra.mxu0 0
        %408 = vmatprep.subr.bf16.mxu0 0
        %409 = vmatpush2.bf16.msra.mxu0 0
        %410 = vmatprep.subr.bf16.mxu0 0
        %411 = vmatpush2.bf16.msra.mxu0 0
        %412 = vmatprep.subr.bf16.mxu0 0
        %413 = vmatpush2.bf16.msra.mxu0 0
        %414 = vmatprep.subr.bf16.mxu0 0
        %415 = vmatpush2.bf16.msra.mxu0 0
        %416 = vmatprep.subr.bf16.mxu0 0
        %417 = vmatpush2.bf16.msra.mxu0 0
        %418 = vmatprep.subr.bf16.mxu0 0
        %419 = vmatpush2.bf16.msra.mxu0 0
        %420 = vmatprep.mubr.bf16.mxu0 0
        %421 = vmatmul.mubr.bf16.gmra.mxu0 %v386
        %v422 = vpop.f32.mrf.mxu0
        %v423 = vadd.f32 0.0, %v422
        %v424 = vpop.f32.mrf.mxu0
        %v425 = vpop.f32.mrf.mxu0
        %v426 = vadd.f32 0.0, %v425
        %v427 = vpop.f32.mrf.mxu0
        %428 = vdwg.mxu0
        %v429 = vadd.f32 %v369, %v423
        %v430 = vadd.f32 %v370, %v426
        %v431 = vtanh.pop %v429
        %v432 = vtanh.pop %v430
        %v433 = vld [vmem:[%s4] sm:$0x1]
        %v434 = vpack.c.bf16 %v432, %v431
        %v435 = vld [vmem:[%s3] sm:$0xf]
        %v436 = vld [vmem:[%s3 + $0x4] sm:$0xf]
        %v437 = vld [vmem:[%s3 + $0x8] sm:$0xf]
        %v438 = vld [vmem:[%s3 + $0xc] sm:$0xf]
        %v443 = vunpack.c.l.b16 %v435
        %v444 = vunpack.c.l.b16 %v436
        %v445 = vunpack.c.l.b16 %v437
        %v446 = vunpack.c.l.b16 %v438
        %v447 = vpack.c.b16 %v444, %v443
        %v448 = vpack.c.b16 %v446, %v445
        %vm451 = vcmask 261120
        %v453 = vsel %vm451, %v434, 0
        %455 = vmatprep.subr.bf16.mxu0 0
        %456 = vmatpush1.bf16.msra.mxu0 0
        %457 = vmatprep.subr.bf16.mxu0 0
        %458 = vmatpush1.bf16.msra.mxu0 0
        %459 = vmatprep.subr.bf16.mxu0 0
        %460 = vmatpush1.bf16.msra.mxu0 0
        %461 = vmatprep.subr.bf16.mxu0 0
        %462 = vmatpush1.bf16.msra.mxu0 0
        %463 = vmatprep.subr.bf16.mxu0 0
        %464 = vmatpush1.bf16.msra.mxu0 0
        %465 = vmatprep.subr.bf16.mxu0 0
        %466 = vmatpush1.bf16.msra.mxu0 0
        %467 = vmatprep.subr.bf16.mxu0 0
        %468 = vmatpush1.bf16.msra.mxu0 %v448
        %469 = vmatprep.subr.bf16.mxu0 0
        %470 = vmatpush1.bf16.msra.mxu0 %v447
        %471 = vmatprep.subr.bf16.mxu0 0
        %472 = vmatpush2.bf16.msra.mxu0 0
        %473 = vmatprep.subr.bf16.mxu0 0
        %474 = vmatpush2.bf16.msra.mxu0 0
        %475 = vmatprep.subr.bf16.mxu0 0
        %476 = vmatpush2.bf16.msra.mxu0 0
        %477 = vmatprep.subr.bf16.mxu0 0
        %478 = vmatpush2.bf16.msra.mxu0 0
        %479 = vmatprep.subr.bf16.mxu0 0
        %480 = vmatpush2.bf16.msra.mxu0 0
        %481 = vmatprep.subr.bf16.mxu0 0
        %482 = vmatpush2.bf16.msra.mxu0 0
        %483 = vmatprep.subr.bf16.mxu0 0
        %484 = vmatpush2.bf16.msra.mxu0 0
        %485 = vmatprep.subr.bf16.mxu0 0
        %486 = vmatpush2.bf16.msra.mxu0 0
        %487 = vmatprep.mubr.bf16.mxu0 0
        %488 = vmatmul.mubr.bf16.gmra.mxu0 %v453
        %v489 = vpop.f32.mrf.mxu0
        %v490 = vadd.f32 0.0, %v489
        %v491 = vpop.f32.mrf.mxu0
        %v492 = vpop.f32.mrf.mxu0
        %v493 = vadd.f32 0.0, %v492
        %v494 = vpop.f32.mrf.mxu0
        %495 = vdwg.mxu0
        %v497 = vlaneseq
        %v498 = vshrl.u32 %v497, 7
        %v499 = vsub.s32 0, %v498
        %v500 = vrot.slane %v433, %v499
        %v502 = vadd.f32 %v500, %v490
        %v503 = vadd.f32 %v500, %v493
        %v504 = vmul.f32 %v431, 2.0
        %v505 = vmul.f32 %v432, 2.0
        %v506 = vmul.f32 %v504, %v431
        %v507 = vmul.f32 %v505, %v432
        %v508 = vsub.f32 %v506, 1.0
        %v509 = vsub.f32 %v507, 1.0
        %v510 = vpack.c.bf16 %v509, %v508
        %s511 = scalar_lea.vmem %s3, 16
        %v512 = vld [vmem:[%s511] sm:$0xf]
        %v513 = vld [vmem:[%s511 + $0x4] sm:$0xf]
        %v514 = vld [vmem:[%s511 + $0x8] sm:$0xf]
        %v515 = vld [vmem:[%s511 + $0xc] sm:$0xf]
        %v520 = vunpack.c.l.b16 %v512
        %v521 = vunpack.c.l.b16 %v513
        %v522 = vunpack.c.l.b16 %v514
        %v523 = vunpack.c.l.b16 %v515
        %v524 = vpack.c.b16 %v521, %v520
        %v525 = vpack.c.b16 %v523, %v522
        %v529 = vsel %vm451, %v510, 0
        %531 = vmatprep.subr.bf16.mxu0 0
        %532 = vmatpush1.bf16.msra.mxu0 0
        %533 = vmatprep.subr.bf16.mxu0 0
        %534 = vmatpush1.bf16.msra.mxu0 0
        %535 = vmatprep.subr.bf16.mxu0 0
        %536 = vmatpush1.bf16.msra.mxu0 0
        %537 = vmatprep.subr.bf16.mxu0 0
        %538 = vmatpush1.bf16.msra.mxu0 0
        %539 = vmatprep.subr.bf16.mxu0 0
        %540 = vmatpush1.bf16.msra.mxu0 0
        %541 = vmatprep.subr.bf16.mxu0 0
        %542 = vmatpush1.bf16.msra.mxu0 0
        %543 = vmatprep.subr.bf16.mxu0 0
        %544 = vmatpush1.bf16.msra.mxu0 %v525
        %545 = vmatprep.subr.bf16.mxu0 0
        %546 = vmatpush1.bf16.msra.mxu0 %v524
        %547 = vmatprep.subr.bf16.mxu0 0
        %548 = vmatpush2.bf16.msra.mxu0 0
        %549 = vmatprep.subr.bf16.mxu0 0
        %550 = vmatpush2.bf16.msra.mxu0 0
        %551 = vmatprep.subr.bf16.mxu0 0
        %552 = vmatpush2.bf16.msra.mxu0 0
        %553 = vmatprep.subr.bf16.mxu0 0
        %554 = vmatpush2.bf16.msra.mxu0 0
        %555 = vmatprep.subr.bf16.mxu0 0
        %556 = vmatpush2.bf16.msra.mxu0 0
        %557 = vmatprep.subr.bf16.mxu0 0
        %558 = vmatpush2.bf16.msra.mxu0 0
        %559 = vmatprep.subr.bf16.mxu0 0
        %560 = vmatpush2.bf16.msra.mxu0 0
        %561 = vmatprep.subr.bf16.mxu0 0
        %562 = vmatpush2.bf16.msra.mxu0 0
        %563 = vmatprep.mubr.bf16.mxu0 0
        %564 = vmatmul.mubr.bf16.gmra.mxu0 %v529
        %v565 = vpop.f32.mrf.mxu0
        %v566 = vadd.f32 0.0, %v565
        %v567 = vpop.f32.mrf.mxu0
        %v568 = vpop.f32.mrf.mxu0
        %v569 = vadd.f32 0.0, %v568
        %v570 = vpop.f32.mrf.mxu0
        %571 = vdwg.mxu0
        %v572 = vadd.f32 %v502, %v566
        %v573 = vadd.f32 %v503, %v569
        %v574 = vmul.f32 %v504, %v508
        %v575 = vmul.f32 %v505, %v509
        %v576 = vsub.f32 %v574, %v431
        %v577 = vsub.f32 %v575, %v432
        %v578 = vpack.c.bf16 %v577, %v576
        %s579 = scalar_lea.vmem %s3, 32
        %v580 = vld [vmem:[%s579] sm:$0xf]
        %v581 = vld [vmem:[%s579 + $0x4] sm:$0xf]
        %v582 = vld [vmem:[%s579 + $0x8] sm:$0xf]
        %v583 = vld [vmem:[%s579 + $0xc] sm:$0xf]
        %v588 = vunpack.c.l.b16 %v580
        %v589 = vunpack.c.l.b16 %v581
        %v590 = vunpack.c.l.b16 %v582
        %v591 = vunpack.c.l.b16 %v583
        %v592 = vpack.c.b16 %v589, %v588
        %v593 = vpack.c.b16 %v591, %v590
        %v597 = vsel %vm451, %v578, 0
        %599 = vmatprep.subr.bf16.mxu0 0
        %600 = vmatpush1.bf16.msra.mxu0 0
        %601 = vmatprep.subr.bf16.mxu0 0
        %602 = vmatpush1.bf16.msra.mxu0 0
        %603 = vmatprep.subr.bf16.mxu0 0
        %604 = vmatpush1.bf16.msra.mxu0 0
        %605 = vmatprep.subr.bf16.mxu0 0
        %606 = vmatpush1.bf16.msra.mxu0 0
        %607 = vmatprep.subr.bf16.mxu0 0
        %608 = vmatpush1.bf16.msra.mxu0 0
        %609 = vmatprep.subr.bf16.mxu0 0
        %610 = vmatpush1.bf16.msra.mxu0 0
        %611 = vmatprep.subr.bf16.mxu0 0
        %612 = vmatpush1.bf16.msra.mxu0 %v593
        %613 = vmatprep.subr.bf16.mxu0 0
        %614 = vmatpush1.bf16.msra.mxu0 %v592
        %615 = vmatprep.subr.bf16.mxu0 0
        %616 = vmatpush2.bf16.msra.mxu0 0
        %617 = vmatprep.subr.bf16.mxu0 0
        %618 = vmatpush2.bf16.msra.mxu0 0
        %619 = vmatprep.subr.bf16.mxu0 0
        %620 = vmatpush2.bf16.msra.mxu0 0
        %621 = vmatprep.subr.bf16.mxu0 0
        %622 = vmatpush2.bf16.msra.mxu0 0
        %623 = vmatprep.subr.bf16.mxu0 0
        %624 = vmatpush2.bf16.msra.mxu0 0
        %625 = vmatprep.subr.bf16.mxu0 0
        %626 = vmatpush2.bf16.msra.mxu0 0
        %627 = vmatprep.subr.bf16.mxu0 0
        %628 = vmatpush2.bf16.msra.mxu0 0
        %629 = vmatprep.subr.bf16.mxu0 0
        %630 = vmatpush2.bf16.msra.mxu0 0
        %631 = vmatprep.mubr.bf16.mxu0 0
        %632 = vmatmul.mubr.bf16.gmra.mxu0 %v597
        %v633 = vpop.f32.mrf.mxu0
        %v634 = vadd.f32 0.0, %v633
        %v635 = vpop.f32.mrf.mxu0
        %v636 = vpop.f32.mrf.mxu0
        %v637 = vadd.f32 0.0, %v636
        %v638 = vpop.f32.mrf.mxu0
        %639 = vdwg.mxu0
        %v640 = vadd.f32 %v572, %v634
        %v641 = vadd.f32 %v573, %v637
        %642 = vst.msk [vmem:[%s233] sm:$0xff] %vm451, %v640
        %643 = vst.msk [vmem:[%s233 + $0x8] sm:$0xff] %vm451, %v641
        %s644 = sand.u32 %s138, 1
        %s645 = scalar_lea.sflag [#allocation4], %s644
        %s646 = sand.u32 %s138, 1
        %s647 = smul.addr %s646, 16
        %s648 = scalar_lea.vmem [#allocation5], %s647
        // Predicated region
        $region45: #{tpu_custom_call.1} parent=39 // pred_check
          %p649 = pneg %p148
        $region46: #{tpu_custom_call.1} parent=39 // pred_check_branch
          %651 = sbr.rel (%p649) target = $region48
        $region47: #{tpu_custom_call.1} parent=39 // pred_region
          %s652 = smul.u32 2, %s20
          %s654 = ssub.s32 256, 256
          %655 = vsyncadd %s645, %s654
          %s656 = smul.addr %s652, 128
          %s657 = scalar_lea.hbm %s5, %s656
          %s658 = sshll.u32 %s648, 4
          %s659 = int_to_ptr.vmem [resolvable:$true] %s658
          %664 = dma.vmem_to_hbm [thread:$0]  %s659, 256, %s657, %s645, 128, 128, 8
        $region48: #{tpu_custom_call.1} parent=39 // pred_fallthru
          _
      $region40: #{tpu_custom_call.1} parent=5 // pred_fallthru
        _
      %p665 = scmp.le.s32.totalorder 2, %s15
      // Predicated region
      $region49: #{tpu_custom_call.1} parent=5 // pred_check
        %p666 = pneg %p665
      $region50: #{tpu_custom_call.1} parent=5 // pred_check_branch
        %668 = sbr.rel (%p666) target = $region52
      $region51: #{tpu_custom_call.1} parent=5 // pred_region
        %s669 = ssub.s32 %s15, 2
        // Predicated region
        $region53: #{tpu_custom_call.1} parent=51 // pred_check
          %p670 = pneg %p154
        $region54: #{tpu_custom_call.1} parent=51 // pred_check_branch
          %672 = sbr.rel (%p670) target = $region56
        $region55: #{tpu_custom_call.1} parent=51 // pred_region
          %s673 = sand.u32 %s139, 1
          %s674 = scalar_lea.sflag [#allocation4], %s673
          %s675 = sand.u32 %s139, 1
          %s676 = smul.addr %s675, 16
          %s677 = scalar_lea.vmem [#allocation5], %s676
          %678 = dma.done %s674, 256
        $region56: #{tpu_custom_call.1} parent=51 // pred_fallthru
          _
      $region52: #{tpu_custom_call.1} parent=5 // pred_fallthru
        _
    $region6: #{tpu_custom_call.1} parent=1 // loop_footer
      %s19 = sadd.s32 1, %s15
    $region7: #{tpu_custom_call.1} parent=1 // loop_footer_branch
      %14 = sbr.rel target = $region3
    $region8: #{tpu_custom_call.1} parent=1 // loop_exit
      _
    %679 = vsyncpa [#allocation3], 1
    %s680 = scalar_lea.sflag [#allocation3], 1
    %681 = vsyncpa %s680, 1
    %682 = vsyncpa [#allocation4], 1
    %s683 = scalar_lea.sflag [#allocation4], 1
    %684 = vsyncpa %s683, 1

</llo_original>
